<compile_context>
chip_gen: v7x
topology: tpu7x:2x2x1
jax: 0.10.0
libtpu: 0.0.40
codegen_flags: <defaults>
</compile_context>

<pallas_src>
import functools

import jax
import jax.numpy as jnp
from jax.experimental import pallas as pl
from jax.experimental.pallas import tpu as pltpu

LANE = 128
SUBLANE = 8


def _round_up(x, m):
    return ((x + m - 1) // m) * m


def _pad2d(a, rows, cols):
    r, c = a.shape
    return jnp.pad(a, ((0, rows - r), (0, cols - c)))


# --------------------------------------------------------------------------
# Kernels
# --------------------------------------------------------------------------

def gcn_layer1_kernel(a_ref, xw_ref, b_ref, o_ref, acc_ref):
    """Layer 1: H1_rows = LeakyReLU(A[rows, :] @ (X W1) + b1), K-tiled.

    (A @ X) @ W1 == A @ (X @ W1); X @ W1 is precomputed in the wrapper so the
    kernel is a single bf16 MXU matmul with an f32 accumulator over k tiles.
    """
    k = pl.program_id(1)

    @pl.when(k == 0)
    def _():
        acc_ref[...] = jnp.zeros_like(acc_ref)

    acc_ref[...] += jnp.dot(a_ref[...], xw_ref[...],
                            preferred_element_type=jnp.float32)

    @pl.when(k == pl.num_programs(1) - 1)
    def _():
        h = acc_ref[...] + b_ref[...]                 # f32 bias add
        h = jnp.where(h >= 0, h, 0.2 * h)             # LeakyReLU(0.2), f32
        o_ref[...] = h.astype(o_ref.dtype)            # lane-dense bf16 store


def gcn_layer2_fused_kernel(a_ref, h1_ref, w2_ref, b2_ref, p_ref, wc_ref,
                            bc_ref, out_ref, ah_acc, pool_acc):
    """Layer 2 + global_mean_pool + classifier, fully fused.

    Per (row tile i, reduction tile k):
      ah_acc += A[rows, k] @ H1[k, :]                      (f32 accumulator)
    On the last k: H2_rows = LeakyReLU(ah_acc @ W2 + b2) and
      pool_acc += P[:, rows] @ H2_rows                     (f32 accumulator)
    On the very last (i, k): out = pool_acc @ Wc + bc.  H2 never hits HBM.
    """
    i = pl.program_id(0)
    k = pl.program_id(1)
    last_i = pl.num_programs(0) - 1
    last_k = pl.num_programs(1) - 1

    @pl.when((i == 0) & (k == 0))
    def _():
        pool_acc[...] = jnp.zeros_like(pool_acc)

    @pl.when(k == 0)
    def _():
        ah_acc[...] = jnp.zeros_like(ah_acc)

    ah_acc[...] += jnp.dot(a_ref[...], h1_ref[...],
                           preferred_element_type=jnp.float32)

    @pl.when(k == last_k)
    def _():
        h2 = jnp.dot(ah_acc[...].astype(w2_ref.dtype), w2_ref[...],
                     preferred_element_type=jnp.float32) + b2_ref[...]
        h2 = jnp.where(h2 >= 0, h2, 0.2 * h2)          # LeakyReLU(0.2), f32
        pool_acc[...] += jnp.dot(p_ref[...], h2.astype(p_ref.dtype),
                                 preferred_element_type=jnp.float32)

    @pl.when((i == last_i) & (k == last_k))
    def _():
        pooled = pool_acc[...].astype(wc_ref.dtype)
        out_ref[...] = (jnp.dot(pooled, wc_ref[...],
                                preferred_element_type=jnp.float32)
                        + bc_ref[...])


# --------------------------------------------------------------------------
# VMEM budgeting / tile selection
# --------------------------------------------------------------------------

def _vmem_limit_bytes():
    """Per-generation scoped-VMEM limit (leave headroom under physical)."""
    try:
        cap = int(pltpu.get_tpu_info().vmem_capacity_bytes)
    except Exception:
        cap = 64 * 1024 * 1024          # conservative (v7x physical)
    return min(max(cap - 16 * 1024 * 1024, 32 * 1024 * 1024), 100 * 1024 * 1024)


def _tile_vmem_bytes(tm, tk, h_pad, g_pad):
    """Everything resident in the worst (fused) kernel: double-buffered A, X/H1,
    P, layer-1 output tiles, grid-invariant weights, and f32 scratch."""
    bf16, f32 = 2, 4
    a_bufs = 2 * tm * tk * bf16
    x_bufs = 2 * tk * h_pad * bf16
    p_bufs = 2 * g_pad * tm * bf16
    o_bufs = 2 * tm * h_pad * bf16
    w_bufs = 2 * (h_pad * h_pad + h_pad * LANE + 2 * LANE) * bf16
    scratch = tm * h_pad * f32 + g_pad * h_pad * f32
    return a_bufs + x_bufs + p_bufs + o_bufs + w_bufs + scratch


def _choose_tiles(n_pad, h_pad, g_pad, budget_bytes):
    """Largest square (tm, tk) among 128-multiples dividing n_pad that fits."""
    divs = [d for d in range(LANE, min(n_pad, 1024) + 1, LANE) if n_pad % d == 0]
    for t in sorted(divs, reverse=True):
        if _tile_vmem_bytes(t, t, h_pad, g_pad) <= budget_bytes:
            return t, t
    return LANE, LANE   # n_pad is always a multiple of 128; 128x128 always fits


# --------------------------------------------------------------------------
# pallas_call wrappers
# --------------------------------------------------------------------------

def gcn_layer1(a_pad, xw_pad, b_pad, *, tm, tk, vmem_limit):
    n_pad = a_pad.shape[0]
    h_pad = xw_pad.shape[1]
    grid = (n_pad // tm, n_pad // tk)
    return pl.pallas_call(
        gcn_layer1_kernel,
        out_shape=jax.ShapeDtypeStruct((n_pad, h_pad), jnp.bfloat16),
        grid_spec=pltpu.PrefetchScalarGridSpec(
            num_scalar_prefetch=0,
            grid=grid,
            in_specs=[
                pl.BlockSpec((tm, tk), lambda i, k: (i, k)),       # A tile
                pl.BlockSpec((tk, h_pad), lambda i, k: (k, 0)),    # (X W1) tile
                pl.BlockSpec(b_pad.shape, lambda i, k: (0, 0)),    # b1 (full)
            ],
            out_specs=pl.BlockSpec((tm, h_pad), lambda i, k: (i, 0)),
            scratch_shapes=[pltpu.VMEM((tm, h_pad), jnp.float32)],
        ),
        compiler_params=pltpu.CompilerParams(
            dimension_semantics=("parallel", "arbitrary"),
            vmem_limit_bytes=vmem_limit,
        ),
    )(a_pad, xw_pad, b_pad)


def gcn_layer2_pool_classify(a_pad, h1, w2_pad, b2_pad, p_pad, wc_pad, bc_pad,
                             *, tm, tk, vmem_limit):
    n_pad = a_pad.shape[0]
    h1_pad = h1.shape[1]
    h2_pad = w2_pad.shape[1]
    g_pad = p_pad.shape[0]
    o_pad = wc_pad.shape[1]
    grid = (n_pad // tm, n_pad // tk)
    return pl.pallas_call(
        gcn_layer2_fused_kernel,
        out_shape=jax.ShapeDtypeStruct((g_pad, o_pad), jnp.float32),
        grid_spec=pltpu.PrefetchScalarGridSpec(
            num_scalar_prefetch=0,
            grid=grid,
            in_specs=[
                pl.BlockSpec((tm, tk), lambda i, k: (i, k)),        # A tile
                pl.BlockSpec((tk, h1_pad), lambda i, k: (k, 0)),    # H1 tile
                pl.BlockSpec(w2_pad.shape, lambda i, k: (0, 0)),    # W2 (full)
                pl.BlockSpec(b2_pad.shape, lambda i, k: (0, 0)),    # b2 (full)
                pl.BlockSpec((g_pad, tm), lambda i, k: (0, i)),     # P col tile
                pl.BlockSpec(wc_pad.shape, lambda i, k: (0, 0)),    # Wc (full)
                pl.BlockSpec(bc_pad.shape, lambda i, k: (0, 0)),    # bc (full)
            ],
            out_specs=pl.BlockSpec((g_pad, o_pad), lambda i, k: (0, 0)),
            scratch_shapes=[
                pltpu.VMEM((tm, h1_pad), jnp.float32),     # A @ H1 accumulator
                pltpu.VMEM((g_pad, h2_pad), jnp.float32),  # pooled accumulator
            ],
        ),
        compiler_params=pltpu.CompilerParams(
            # Row-tile axis is a reduction for the pooled accumulator, so it
            # must stay sequential ("arbitrary").
            dimension_semantics=("arbitrary", "arbitrary"),
            vmem_limit_bytes=vmem_limit,
        ),
    )(a_pad, h1, w2_pad, b2_pad, p_pad, wc_pad, bc_pad)


# --------------------------------------------------------------------------
# JAX glue: graph matrices (built at padded size), padding, forward
# --------------------------------------------------------------------------

def build_norm_adj_padded(edge_index, num_nodes, n_pad):
    """Dense PyG-style GCN normalization, built directly at padded size:
    add self-loops (real nodes only), D^-1/2 A D^-1/2.  Padded rows/cols = 0."""
    src, dst = edge_index[0], edge_index[1]
    loop = jnp.arange(num_nodes, dtype=src.dtype)
    src = jnp.concatenate([src, loop])
    dst = jnp.concatenate([dst, loop])
    a = jnp.zeros((n_pad, n_pad), jnp.float32).at[dst, src].add(1.0)
    deg = a.sum(axis=1)
    d_inv_sqrt = jnp.where(deg > 0, 1.0 / jnp.sqrt(deg), 0.0)
    return d_inv_sqrt[:, None] * a * d_inv_sqrt[None, :]


def build_pool_matrix_padded(batch, num_graphs, num_nodes, g_pad, n_pad):
    """P[g, n] = 1/count_g if batch[n] == g else 0 (global_mean_pool),
    built at padded size; padded node columns and padded graph rows are 0."""
    batch_pad = jnp.full((n_pad,), -1, batch.dtype).at[:num_nodes].set(batch)
    one_hot = (batch_pad[None, :] ==
               jnp.arange(g_pad, dtype=batch.dtype)[:, None]).astype(jnp.float32)
    counts = jnp.maximum(one_hot.sum(axis=1, keepdims=True), 1.0)
    return one_hot / counts


@functools.partial(jax.jit, static_argnames="num_graphs")
def gcn_forward(x, edge_index, batch, params, num_graphs):
    n, _ = x.shape
    w1, b1, w2, b2, wc, bc = params
    h1_dim, h2_dim, out_dims = w1.shape[1], w2.shape[1], wc.shape[1]

    # Padded (lane-dense) sizes.
    n_pad = _round_up(n, LANE)
    h1_pad = _round_up(h1_dim, LANE)
    h2_pad = _round_up(h2_dim, LANE)
    o_pad = _round_up(out_dims, LANE)
    g_pad = _round_up(num_graphs, SUBLANE)

    # Graph matrices built once at padded size, cast to bf16 once.
    a_pad = build_norm_adj_padded(edge_index, n, n_pad).astype(jnp.bfloat16)
    p_pad = build_pool_matrix_padded(batch, num_graphs, n,
                                     g_pad, n_pad).astype(jnp.bfloat16)

    # Layer-1 right operand precomputed in f32 at true shapes (tiny matmul),
    # so the layer-1 kernel streams A once against a single 128-wide operand.
    xw1_pad = _pad2d(x @ w1, n_pad, h1_pad).astype(jnp.bfloat16)
    b1_p = _pad2d(b1, 1, h1_pad).astype(jnp.float32)
    w2_p = _pad2d(w2, h1_pad, h2_pad).astype(jnp.bfloat16)
    b2_p = _pad2d(b2, 1, h2_pad).astype(jnp.float32)
    wc_p = _pad2d(wc, h2_pad, o_pad).astype(jnp.bfloat16)
    bc_p = _pad2d(bc, 1, o_pad).astype(jnp.float32)

    vmem_limit = _vmem_limit_bytes()
    tm, tk = _choose_tiles(n_pad, max(h1_pad, h2_pad), g_pad,
                           budget_bytes=(vmem_limit * 3) // 4)

    h1 = gcn_layer1(a_pad, xw1_pad, b1_p, tm=tm, tk=tk,
                    vmem_limit=vmem_limit)                  # [n_pad, h1_pad] bf16
    out_full = gcn_layer2_pool_classify(a_pad, h1, w2_p, b2_p, p_pad, wc_p,
                                        bc_p, tm=tm, tk=tk,
                                        vmem_limit=vmem_limit)
    return out_full[:num_graphs, :out_dims]


def gcn_reference(x, a, p, params):
    """Pure-JAX f32 reference for the forward pass."""
    w1, b1, w2, b2, wc, bc = params

    def lrelu(v):
        return jnp.where(v >= 0, v, 0.2 * v)

    h = lrelu(a @ (x @ w1) + b1)
    h = lrelu(a @ (h @ w2) + b2)
    return (p @ h) @ wc + bc


def init_params(key, input_dims, hidden_dims, output_dims):
    """Deterministic synthetic init (glorot-ish normal) matching module shapes."""
    dims = [input_dims] + list(hidden_dims)
    keys = jax.random.split(key, len(hidden_dims) + 1)
    params = []
    for i in range(len(hidden_dims)):
        fan_in, fan_out = dims[i], dims[i + 1]
        scale = jnp.sqrt(2.0 / (fan_in + fan_out))
        w = scale * jax.random.normal(keys[i], (fan_in, fan_out), jnp.float32)
        b = jnp.zeros((1, fan_out), jnp.float32)
        params += [w, b]
    scale = jnp.sqrt(2.0 / (hidden_dims[-1] + output_dims))
    wc = scale * jax.random.normal(keys[-1], (hidden_dims[-1], output_dims),
                                   jnp.float32)
    bc = jnp.zeros((1, output_dims), jnp.float32)
    params += [wc, bc]
    return tuple(params)


if __name__ == "__main__":
    # Small synthetic problem: 16 nodes (2 graphs of 8 nodes), 4 input feats,
    # hidden_dims = [32, 32], 3 output classes.
    N, F_IN, HIDDEN, OUT, G = 16, 4, [32, 32], 3, 2
    key = jax.random.PRNGKey(0)
    kx, ke, kp = jax.random.split(key, 3)

    x = jax.random.normal(kx, (N, F_IN), jnp.float32)

    # Random undirected edges kept within each graph's node range.
    e_per_graph = 10
    src0 = jax.random.randint(ke, (e_per_graph,), 0, N // 2)
    dst0 = jax.random.randint(jax.random.fold_in(ke, 1), (e_per_graph,), 0, N // 2)
    src1 = jax.random.randint(jax.random.fold_in(ke, 2), (e_per_graph,), N // 2, N)
    dst1 = jax.random.randint(jax.random.fold_in(ke, 3), (e_per_graph,), N // 2, N)
    src = jnp.concatenate([src0, src1, dst0, dst1])   # symmetrize
    dst = jnp.concatenate([dst0, dst1, src0, src1])
    edge_index = jnp.stack([src, dst], axis=0)

    batch = jnp.concatenate([jnp.zeros(N // 2, jnp.int32),
                             jnp.ones(N // 2, jnp.int32)])

    params = init_params(kp, F_IN, HIDDEN, OUT)

    out = gcn_forward(x, edge_index, batch, params, num_graphs=G)
    out = jax.block_until_ready(out)
    assert out.shape == (G, OUT)

    # Loose tolerance: kernels use bf16 MXU operands with f32 accumulation.
    a_ref = build_norm_adj_padded(edge_index, N, N)
    p_ref = build_pool_matrix_padded(batch, G, N, G, N)
    ref = gcn_reference(x, a_ref, p_ref, params)
    max_err = float(jnp.max(jnp.abs(out - ref)))
    assert max_err < 0.15, f"max abs error {max_err}"

    print("KERNEL_OK")
</pallas_src>

<mosaic_0001>
module attributes {stable_mosaic.version = 11 : i64} {
  func.func @gcn_layer1_kernel(%arg0: i32, %arg1: i32, %arg2: memref<128x128xbf16, #tpu.memory_space<vmem>>, %arg3: memref<128x128xbf16, #tpu.memory_space<vmem>>, %arg4: memref<1x128xf32, #tpu.memory_space<vmem>>, %arg5: memref<128x128xbf16, #tpu.memory_space<vmem>>, %arg6: memref<128x128xf32, #tpu.memory_space<vmem>>) attributes {dimension_semantics = [#tpu.dimension_semantics<parallel>, #tpu.dimension_semantics<arbitrary>], iteration_bounds = array<i64: 1, 1>, scalar_prefetch = 0 : i64, scratch_operands = 1 : i64, tpu.core_type = #tpu.core_type<tc>, window_params = [{transform_indices = @transform_0, window_bounds = array<i64: 128, 128>}, {transform_indices = @transform_1, window_bounds = array<i64: 128, 128>}, {pipeline_mode = #tpu.pipeline_mode<synchronous>, transform_indices = @transform_2, window_bounds = array<i64: 1, 128>}, {transform_indices = @transform_3, window_bounds = array<i64: 128, 128>}]} {
    %c0_i32 = arith.constant 0 : i32
    %0 = arith.cmpi eq, %arg1, %c0_i32 : i32
    %1 = arith.extui %0 : i1 to i32
    %c0_i32_0 = arith.constant 0 : i32
    %2 = arith.cmpi ne, %1, %c0_i32_0 : i32
    scf.if %2 {
      %cst_10 = arith.constant 0.000000e+00 : f32
      %12 = vector.broadcast %cst_10 : f32 to vector<128x128xf32>
      %c0_11 = arith.constant 0 : index
      %c0_12 = arith.constant 0 : index
      %13 = vector.load %arg6[%c0_11, %c0_12] : memref<128x128xf32, #tpu.memory_space<vmem>>, vector<128x128xf32>
      tpu.vector_store %arg6[%c0_11, %c0_12], %12 {strides = array<i32>} : memref<128x128xf32, #tpu.memory_space<vmem>>, vector<128x128xf32>,
    } else {
    }
    %c0 = arith.constant 0 : index
    %c0_1 = arith.constant 0 : index
    %3 = vector.load %arg6[%c0, %c0_1] : memref<128x128xf32, #tpu.memory_space<vmem>>, vector<128x128xf32>
    %c0_2 = arith.constant 0 : index
    %c0_3 = arith.constant 0 : index
    %4 = vector.load %arg2[%c0_2, %c0_3] : memref<128x128xbf16, #tpu.memory_space<vmem>>, vector<128x128xbf16>
    %c0_4 = arith.constant 0 : index
    %c0_5 = arith.constant 0 : index
    %5 = vector.load %arg3[%c0_4, %c0_5] : memref<128x128xbf16, #tpu.memory_space<vmem>>, vector<128x128xbf16>
    %cst = arith.constant dense<0.000000e+00> : vector<128x128xf32>
    %6 = tpu.matmul %4, %5, %cst {dimension_numbers = #tpu.dot_dimension_numbers<[1], [0], [0], [1], [0, 0, 1, 1], [], []>} : vector<128x128xbf16>, vector<128x128xbf16>, vector<128x128xf32> -> vector<128x128xf32>
    %7 = arith.addf %3, %6 : vector<128x128xf32>
    %c0_6 = arith.constant 0 : index
    %c0_7 = arith.constant 0 : index
    %8 = vector.load %arg6[%c0_6, %c0_7] : memref<128x128xf32, #tpu.memory_space<vmem>>, vector<128x128xf32>
    tpu.vector_store %arg6[%c0_6, %c0_7], %7 {strides = array<i32>} : memref<128x128xf32, #tpu.memory_space<vmem>>, vector<128x128xf32>,
    %c0_i32_8 = arith.constant 0 : i32
    %9 = arith.cmpi eq, %arg1, %c0_i32_8 : i32
    %10 = arith.extui %9 : i1 to i32
    %c0_i32_9 = arith.constant 0 : i32
    %11 = arith.cmpi ne, %10, %c0_i32_9 : i32
    scf.if %11 {
      %c0_10 = arith.constant 0 : index
      %c0_11 = arith.constant 0 : index
      %12 = vector.load %arg6[%c0_10, %c0_11] : memref<128x128xf32, #tpu.memory_space<vmem>>, vector<128x128xf32>
      %c0_12 = arith.constant 0 : index
      %c0_13 = arith.constant 0 : index
      %13 = vector.load %arg4[%c0_12, %c0_13] : memref<1x128xf32, #tpu.memory_space<vmem>>, vector<1x128xf32>
      %14 = vector.broadcast %13 : vector<1x128xf32> to vector<128x128xf32>
      %15 = arith.addf %12, %14 : vector<128x128xf32>
      %cst_14 = arith.constant 0.000000e+00 : f32
      %16 = vector.broadcast %cst_14 : f32 to vector<128x128xf32>
      %17 = arith.cmpf oge, %15, %16 : vector<128x128xf32>
      %cst_15 = arith.constant 2.000000e-01 : f32
      %18 = vector.broadcast %cst_15 : f32 to vector<128x128xf32>
      %19 = arith.mulf %18, %15 : vector<128x128xf32>
      %20 = arith.select %17, %15, %19 : vector<128x128xi1>, vector<128x128xf32>
      %21 = arith.truncf %20 : vector<128x128xf32> to vector<128x128xbf16>
      %c0_16 = arith.constant 0 : index
      %c0_17 = arith.constant 0 : index
      %22 = vector.load %arg5[%c0_16, %c0_17] : memref<128x128xbf16, #tpu.memory_space<vmem>>, vector<128x128xbf16>
      tpu.vector_store %arg5[%c0_16, %c0_17], %21 {strides = array<i32>} : memref<128x128xbf16, #tpu.memory_space<vmem>>, vector<128x128xbf16>,
    } else {
    }
    return
  }
  func.func @transform_0(%arg0: i32, %arg1: i32) -> (i32, i32) {
    %c0_i32 = arith.constant 0 : i32
    return %arg0, %arg1 : i32, i32
  }
  func.func @transform_1(%arg0: i32, %arg1: i32) -> (i32, i32) {
    %c0_i32 = arith.constant 0 : i32
    %c0_i32_0 = arith.constant 0 : i32
    return %arg1, %c0_i32 : i32, i32
  }
  func.func @transform_2(%arg0: i32, %arg1: i32) -> (i32, i32) {
    %c0_i32 = arith.constant 0 : i32
    %c0_i32_0 = arith.constant 0 : i32
    %c0_i32_1 = arith.constant 0 : i32
    return %c0_i32, %c0_i32_0 : i32, i32
  }
  func.func @transform_3(%arg0: i32, %arg1: i32) -> (i32, i32) {
    %c0_i32 = arith.constant 0 : i32
    %c0_i32_0 = arith.constant 0 : i32
    return %arg0, %c0_i32 : i32, i32
  }
}

module attributes {stable_mosaic.version = 11 : i64} {
  func.func @gcn_layer2_fused_kernel(%arg0: i32, %arg1: i32, %arg2: memref<128x128xbf16, #tpu.memory_space<vmem>>, %arg3: memref<128x128xbf16, #tpu.memory_space<vmem>>, %arg4: memref<128x128xbf16, #tpu.memory_space<vmem>>, %arg5: memref<1x128xf32, #tpu.memory_space<vmem>>, %arg6: memref<8x128xbf16, #tpu.memory_space<vmem>>, %arg7: memref<128x128xbf16, #tpu.memory_space<vmem>>, %arg8: memref<1x128xf32, #tpu.memory_space<vmem>>, %arg9: memref<8x128xf32, #tpu.memory_space<vmem>>, %arg10: memref<128x128xf32, #tpu.memory_space<vmem>>, %arg11: memref<8x128xf32, #tpu.memory_space<vmem>>) attributes {dimension_semantics = [#tpu.dimension_semantics<arbitrary>, #tpu.dimension_semantics<arbitrary>], iteration_bounds = array<i64: 1, 1>, scalar_prefetch = 0 : i64, scratch_operands = 2 : i64, tpu.core_type = #tpu.core_type<tc>, window_params = [{transform_indices = @transform_0, window_bounds = array<i64: 128, 128>}, {transform_indices = @transform_1, window_bounds = array<i64: 128, 128>}, {pipeline_mode = #tpu.pipeline_mode<synchronous>, transform_indices = @transform_2, window_bounds = array<i64: 128, 128>}, {pipeline_mode = #tpu.pipeline_mode<synchronous>, transform_indices = @transform_3, window_bounds = array<i64: 1, 128>}, {transform_indices = @transform_4, window_bounds = array<i64: 8, 128>}, {pipeline_mode = #tpu.pipeline_mode<synchronous>, transform_indices = @transform_5, window_bounds = array<i64: 128, 128>}, {pipeline_mode = #tpu.pipeline_mode<synchronous>, transform_indices = @transform_6, window_bounds = array<i64: 1, 128>}, {pipeline_mode = #tpu.pipeline_mode<synchronous>, transform_indices = @transform_7, window_bounds = array<i64: 8, 128>}]} {
    %c0_i32 = arith.constant 0 : i32
    %0 = arith.cmpi eq, %arg0, %c0_i32 : i32
    %c0_i32_0 = arith.constant 0 : i32
    %1 = arith.cmpi eq, %arg1, %c0_i32_0 : i32
    %2 = arith.andi %0, %1 : i1
    %3 = arith.extui %2 : i1 to i32
    %c0_i32_1 = arith.constant 0 : i32
    %4 = arith.cmpi ne, %3, %c0_i32_1 : i32
    scf.if %4 {
      %cst_16 = arith.constant 0.000000e+00 : f32
      %22 = vector.broadcast %cst_16 : f32 to vector<8x128xf32>
      %c0_17 = arith.constant 0 : index
      %c0_18 = arith.constant 0 : index
      %23 = vector.load %arg11[%c0_17, %c0_18] : memref<8x128xf32, #tpu.memory_space<vmem>>, vector<8x128xf32>
      tpu.vector_store %arg11[%c0_17, %c0_18], %22 {strides = array<i32>} : memref<8x128xf32, #tpu.memory_space<vmem>>, vector<8x128xf32>,
    } else {
    }
    %c0_i32_2 = arith.constant 0 : i32
    %5 = arith.cmpi eq, %arg1, %c0_i32_2 : i32
    %6 = arith.extui %5 : i1 to i32
    %c0_i32_3 = arith.constant 0 : i32
    %7 = arith.cmpi ne, %6, %c0_i32_3 : i32
    scf.if %7 {
      %cst_16 = arith.constant 0.000000e+00 : f32
      %22 = vector.broadcast %cst_16 : f32 to vector<128x128xf32>
      %c0_17 = arith.constant 0 : index
      %c0_18 = arith.constant 0 : index
      %23 = vector.load %arg10[%c0_17, %c0_18] : memref<128x128xf32, #tpu.memory_space<vmem>>, vector<128x128xf32>
      tpu.vector_store %arg10[%c0_17, %c0_18], %22 {strides = array<i32>} : memref<128x128xf32, #tpu.memory_space<vmem>>, vector<128x128xf32>,
    } else {
    }
    %c0 = arith.constant 0 : index
    %c0_4 = arith.constant 0 : index
    %8 = vector.load %arg10[%c0, %c0_4] : memref<128x128xf32, #tpu.memory_space<vmem>>, vector<128x128xf32>
    %c0_5 = arith.constant 0 : index
    %c0_6 = arith.constant 0 : index
    %9 = vector.load %arg2[%c0_5, %c0_6] : memref<128x128xbf16, #tpu.memory_space<vmem>>, vector<128x128xbf16>
    %c0_7 = arith.constant 0 : index
    %c0_8 = arith.constant 0 : index
    %10 = vector.load %arg3[%c0_7, %c0_8] : memref<128x128xbf16, #tpu.memory_space<vmem>>, vector<128x128xbf16>
    %cst = arith.constant dense<0.000000e+00> : vector<128x128xf32>
    %11 = tpu.matmul %9, %10, %cst {dimension_numbers = #tpu.dot_dimension_numbers<[1], [0], [0], [1], [0, 0, 1, 1], [], []>} : vector<128x128xbf16>, vector<128x128xbf16>, vector<128x128xf32> -> vector<128x128xf32>
    %12 = arith.addf %8, %11 : vector<128x128xf32>
    %c0_9 = arith.constant 0 : index
    %c0_10 = arith.constant 0 : index
    %13 = vector.load %arg10[%c0_9, %c0_10] : memref<128x128xf32, #tpu.memory_space<vmem>>, vector<128x128xf32>
    tpu.vector_store %arg10[%c0_9, %c0_10], %12 {strides = array<i32>} : memref<128x128xf32, #tpu.memory_space<vmem>>, vector<128x128xf32>,
    %c0_i32_11 = arith.constant 0 : i32
    %14 = arith.cmpi eq, %arg1, %c0_i32_11 : i32
    %15 = arith.extui %14 : i1 to i32
    %c0_i32_12 = arith.constant 0 : i32
    %16 = arith.cmpi ne, %15, %c0_i32_12 : i32
    scf.if %16 {
      %c0_16 = arith.constant 0 : index
      %c0_17 = arith.constant 0 : index
      %22 = vector.load %arg10[%c0_16, %c0_17] : memref<128x128xf32, #tpu.memory_space<vmem>>, vector<128x128xf32>
      %23 = arith.truncf %22 : vector<128x128xf32> to vector<128x128xbf16>
      %c0_18 = arith.constant 0 : index
      %c0_19 = arith.constant 0 : index
      %24 = vector.load %arg4[%c0_18, %c0_19] : memref<128x128xbf16, #tpu.memory_space<vmem>>, vector<128x128xbf16>
      %cst_20 = arith.constant dense<0.000000e+00> : vector<128x128xf32>
      %25 = tpu.matmul %23, %24, %cst_20 {dimension_numbers = #tpu.dot_dimension_numbers<[1], [0], [0], [1], [0, 0, 1, 1], [], []>} : vector<128x128xbf16>, vector<128x128xbf16>, vector<128x128xf32> -> vector<128x128xf32>
      %c0_21 = arith.constant 0 : index
      %c0_22 = arith.constant 0 : index
      %26 = vector.load %arg5[%c0_21, %c0_22] : memref<1x128xf32, #tpu.memory_space<vmem>>, vector<1x128xf32>
      %27 = vector.broadcast %26 : vector<1x128xf32> to vector<128x128xf32>
      %28 = arith.addf %25, %27 : vector<128x128xf32>
      %cst_23 = arith.constant 0.000000e+00 : f32
      %29 = vector.broadcast %cst_23 : f32 to vector<128x128xf32>
      %30 = arith.cmpf oge, %28, %29 : vector<128x128xf32>
      %cst_24 = arith.constant 2.000000e-01 : f32
      %31 = vector.broadcast %cst_24 : f32 to vector<128x128xf32>
      %32 = arith.mulf %31, %28 : vector<128x128xf32>
      %33 = arith.select %30, %28, %32 : vector<128x128xi1>, vector<128x128xf32>
      %c0_25 = arith.constant 0 : index
      %c0_26 = arith.constant 0 : index
      %34 = vector.load %arg11[%c0_25, %c0_26] : memref<8x128xf32, #tpu.memory_space<vmem>>, vector<8x128xf32>
      %c0_27 = arith.constant 0 : index
      %c0_28 = arith.constant 0 : index
      %35 = vector.load %arg6[%c0_27, %c0_28] : memref<8x128xbf16, #tpu.memory_space<vmem>>, vector<8x128xbf16>
      %36 = arith.truncf %33 : vector<128x128xf32> to vector<128x128xbf16>
      %cst_29 = arith.constant dense<0.000000e+00> : vector<8x128xf32>
      %37 = tpu.matmul %35, %36, %cst_29 {dimension_numbers = #tpu.dot_dimension_numbers<[1], [0], [0], [1], [0, 0, 1, 1], [], []>} : vector<8x128xbf16>, vector<128x128xbf16>, vector<8x128xf32> -> vector<8x128xf32>
      %38 = arith.addf %34, %37 : vector<8x128xf32>
      %c0_30 = arith.constant 0 : index
      %c0_31 = arith.constant 0 : index
      %39 = vector.load %arg11[%c0_30, %c0_31] : memref<8x128xf32, #tpu.memory_space<vmem>>, vector<8x128xf32>
      tpu.vector_store %arg11[%c0_30, %c0_31], %38 {strides = array<i32>} : memref<8x128xf32, #tpu.memory_space<vmem>>, vector<8x128xf32>,
    } else {
    }
    %c0_i32_13 = arith.constant 0 : i32
    %17 = arith.cmpi eq, %arg0, %c0_i32_13 : i32
    %c0_i32_14 = arith.constant 0 : i32
    %18 = arith.cmpi eq, %arg1, %c0_i32_14 : i32
    %19 = arith.andi %17, %18 : i1
    %20 = arith.extui %19 : i1 to i32
    %c0_i32_15 = arith.constant 0 : i32
    %21 = arith.cmpi ne, %20, %c0_i32_15 : i32
    scf.if %21 {
      %c0_16 = arith.constant 0 : index
      %c0_17 = arith.constant 0 : index
      %22 = vector.load %arg11[%c0_16, %c0_17] : memref<8x128xf32, #tpu.memory_space<vmem>>, vector<8x128xf32>
      %23 = arith.truncf %22 : vector<8x128xf32> to vector<8x128xbf16>
      %c0_18 = arith.constant 0 : index
      %c0_19 = arith.constant 0 : index
      %24 = vector.load %arg7[%c0_18, %c0_19] : memref<128x128xbf16, #tpu.memory_space<vmem>>, vector<128x128xbf16>
      %cst_20 = arith.constant dense<0.000000e+00> : vector<8x128xf32>
      %25 = tpu.matmul %23, %24, %cst_20 {dimension_numbers = #tpu.dot_dimension_numbers<[1], [0], [0], [1], [0, 0, 1, 1], [], []>} : vector<8x128xbf16>, vector<128x128xbf16>, vector<8x128xf32> -> vector<8x128xf32>
      %c0_21 = arith.constant 0 : index
      %c0_22 = arith.constant 0 : index
      %26 = vector.load %arg8[%c0_21, %c0_22] : memref<1x128xf32, #tpu.memory_space<vmem>>, vector<1x128xf32>
      %27 = vector.broadcast %26 : vector<1x128xf32> to vector<8x128xf32>
      %28 = arith.addf %25, %27 : vector<8x128xf32>
      %c0_23 = arith.constant 0 : index
      %c0_24 = arith.constant 0 : index
      %29 = vector.load %arg9[%c0_23, %c0_24] : memref<8x128xf32, #tpu.memory_space<vmem>>, vector<8x128xf32>
      tpu.vector_store %arg9[%c0_23, %c0_24], %28 {strides = array<i32>} : memref<8x128xf32, #tpu.memory_space<vmem>>, vector<8x128xf32>,
    } else {
    }
    return
  }
  func.func @transform_0(%arg0: i32, %arg1: i32) -> (i32, i32) {
    %c0_i32 = arith.constant 0 : i32
    return %arg0, %arg1 : i32, i32
  }
  func.func @transform_1(%arg0: i32, %arg1: i32) -> (i32, i32) {
    %c0_i32 = arith.constant 0 : i32
    %c0_i32_0 = arith.constant 0 : i32
    return %arg1, %c0_i32 : i32, i32
  }
  func.func @transform_2(%arg0: i32, %arg1: i32) -> (i32, i32) {
    %c0_i32 = arith.constant 0 : i32
    %c0_i32_0 = arith.constant 0 : i32
    %c0_i32_1 = arith.constant 0 : i32
    return %c0_i32, %c0_i32_0 : i32, i32
  }
  func.func @transform_3(%arg0: i32, %arg1: i32) -> (i32, i32) {
    %c0_i32 = arith.constant 0 : i32
    %c0_i32_0 = arith.constant 0 : i32
    %c0_i32_1 = arith.constant 0 : i32
    return %c0_i32, %c0_i32_0 : i32, i32
  }
  func.func @transform_4(%arg0: i32, %arg1: i32) -> (i32, i32) {
    %c0_i32 = arith.constant 0 : i32
    %c0_i32_0 = arith.constant 0 : i32
    return %c0_i32, %arg0 : i32, i32
  }
  func.func @transform_5(%arg0: i32, %arg1: i32) -> (i32, i32) {
    %c0_i32 = arith.constant 0 : i32
    %c0_i32_0 = arith.constant 0 : i32
    %c0_i32_1 = arith.constant 0 : i32
    return %c0_i32, %c0_i32_0 : i32, i32
  }
  func.func @transform_6(%arg0: i32, %arg1: i32) -> (i32, i32) {
    %c0_i32 = arith.constant 0 : i32
    %c0_i32_0 = arith.constant 0 : i32
    %c0_i32_1 = arith.constant 0 : i32
    return %c0_i32, %c0_i32_0 : i32, i32
  }
  func.func @transform_7(%arg0: i32, %arg1: i32) -> (i32, i32) {
    %c0_i32 = arith.constant 0 : i32
    %c0_i32_0 = arith.constant 0 : i32
    %c0_i32_1 = arith.constant 0 : i32
    return %c0_i32, %c0_i32_0 : i32, i32
  }
}

</mosaic_0001>

<llo_original>
// kernel: gcn_forward.2
$region0: #{gcn_forward.2}
  #allocation0 [shape = 'u32[]', space=smem, size = 0x4, offset = 0x4, fixed_abs, tag = 'smem constant byte address 0x4 - core index']
  #allocation1 [shape = 'u32[144,128]{1,0:T(1,128)}', space=vmem, size = 0x12000, scoped, tag = 'internal scratch']
  #allocation2 [shape = 'f32[128,128]{1,0:T(8,128)}', space=vmem, size = 0x10000, scoped, tag = 'scratch operand']
  %s0 = inlined_call_operand.vmem [shape: bf16[128,128], index: 0, kind: input, shape index: {}]
  %s1 = inlined_call_operand.vmem [shape: bf16[128,128], index: 1, kind: input, shape index: {}]
  %s2 = inlined_call_operand.vmem [shape: f32[1,128], index: 2, kind: input, shape index: {}]
  %s3 = inlined_call_operand.vmem [shape: bf16[128,128], index: 3, kind: output, shape index: {}]
  %s4 = sld [smem:[#allocation0]]
  $region30: #{gcn_forward.2} parent=0
    _
  %s6 = ssub.s32 1, %s4
  %s7 = scalar_select 0, %s6, %s4
  // Predicated region
  $region2: #{gcn_forward.2} parent=0 // pred_check
    _
  $region3: #{gcn_forward.2} parent=0 // pred_check_branch
    %9 = sbr.rel (0) target = $region5
  $region4: #{gcn_forward.2} parent=0 // pred_region
    _
  $region5: #{gcn_forward.2} parent=0 // pred_fallthru
    _
  // Predicated region
  $region6: #{gcn_forward.2} parent=0 // pred_check
    _
  $region7: #{gcn_forward.2} parent=0 // pred_check_branch
    %11 = sbr.rel (0) target = $region9
  $region8: #{gcn_forward.2} parent=0 // pred_region
    _
  $region9: #{gcn_forward.2} parent=0 // pred_fallthru
    _
  // Predicated region
  $region10: #{gcn_forward.2} parent=0 // pred_check
    _
  $region11: #{gcn_forward.2} parent=0 // pred_check_branch
    %13 = sbr.rel (0) target = $region13
  $region12: #{gcn_forward.2} parent=0 // pred_region
    _
  $region13: #{gcn_forward.2} parent=0 // pred_fallthru
    _
  %p15 = scmp.eq.s32.totalorder 0, 0
  // Predicated region
  $region14: #{gcn_forward.2} parent=0 // pred_check
    %p16 = pneg %p15
  $region15: #{gcn_forward.2} parent=0 // pred_check_branch
    %18 = sbr.rel (%p16) target = $region17
  $region16: #{gcn_forward.2} parent=0 // pred_region
    %19 = vst [vmem:[#allocation2] sm:$0xff] 0.0
    %20 = vst [vmem:[#allocation2 + $0x8] sm:$0xff] 0.0
    %21 = vst [vmem:[#allocation2 + $0x10] sm:$0xff] 0.0
    %22 = vst [vmem:[#allocation2 + $0x18] sm:$0xff] 0.0
    %23 = vst [vmem:[#allocation2 + $0x20] sm:$0xff] 0.0
    %24 = vst [vmem:[#allocation2 + $0x28] sm:$0xff] 0.0
    %25 = vst [vmem:[#allocation2 + $0x30] sm:$0xff] 0.0
    %26 = vst [vmem:[#allocation2 + $0x38] sm:$0xff] 0.0
    %27 = vst [vmem:[#allocation2 + $0x40] sm:$0xff] 0.0
    %28 = vst [vmem:[#allocation2 + $0x48] sm:$0xff] 0.0
    %29 = vst [vmem:[#allocation2 + $0x50] sm:$0xff] 0.0
    %30 = vst [vmem:[#allocation2 + $0x58] sm:$0xff] 0.0
    %31 = vst [vmem:[#allocation2 + $0x60] sm:$0xff] 0.0
    %32 = vst [vmem:[#allocation2 + $0x68] sm:$0xff] 0.0
    %33 = vst [vmem:[#allocation2 + $0x70] sm:$0xff] 0.0
    %34 = vst [vmem:[#allocation2 + $0x78] sm:$0xff] 0.0
  $region17: #{gcn_forward.2} parent=0 // pred_fallthru
    _
  %v35 = vld [vmem:[#allocation2] sm:$0xff]
  %v36 = vld [vmem:[#allocation2 + $0x8] sm:$0xff]
  %v37 = vld [vmem:[#allocation2 + $0x10] sm:$0xff]
  %v38 = vld [vmem:[#allocation2 + $0x18] sm:$0xff]
  %v39 = vld [vmem:[#allocation2 + $0x20] sm:$0xff]
  %v40 = vld [vmem:[#allocation2 + $0x28] sm:$0xff]
  %v41 = vld [vmem:[#allocation2 + $0x30] sm:$0xff]
  %v42 = vld [vmem:[#allocation2 + $0x38] sm:$0xff]
  %v43 = vld [vmem:[#allocation2 + $0x40] sm:$0xff]
  %v44 = vld [vmem:[#allocation2 + $0x48] sm:$0xff]
  %v45 = vld [vmem:[#allocation2 + $0x50] sm:$0xff]
  %v46 = vld [vmem:[#allocation2 + $0x58] sm:$0xff]
  %v47 = vld [vmem:[#allocation2 + $0x60] sm:$0xff]
  %v48 = vld [vmem:[#allocation2 + $0x68] sm:$0xff]
  %v49 = vld [vmem:[#allocation2 + $0x70] sm:$0xff]
  %v50 = vld [vmem:[#allocation2 + $0x78] sm:$0xff]
  %v51 = vld [vmem:[%s0] sm:$0xf]
  %v52 = vld [vmem:[%s0 + $0x4] sm:$0xf]
  %v53 = vld [vmem:[%s0 + $0x8] sm:$0xf]
  %v54 = vld [vmem:[%s0 + $0xc] sm:$0xf]
  %v55 = vld [vmem:[%s0 + $0x10] sm:$0xf]
  %v56 = vld [vmem:[%s0 + $0x14] sm:$0xf]
  %v57 = vld [vmem:[%s0 + $0x18] sm:$0xf]
  %v58 = vld [vmem:[%s0 + $0x1c] sm:$0xf]
  %v59 = vld [vmem:[%s0 + $0x20] sm:$0xf]
  %v60 = vld [vmem:[%s0 + $0x24] sm:$0xf]
  %v61 = vld [vmem:[%s0 + $0x28] sm:$0xf]
  %v62 = vld [vmem:[%s0 + $0x2c] sm:$0xf]
  %v63 = vld [vmem:[%s0 + $0x30] sm:$0xf]
  %v64 = vld [vmem:[%s0 + $0x34] sm:$0xf]
  %v65 = vld [vmem:[%s0 + $0x38] sm:$0xf]
  %v66 = vld [vmem:[%s0 + $0x3c] sm:$0xf]
  %v67 = vld [vmem:[%s1] sm:$0xf]
  %v68 = vld [vmem:[%s1 + $0x4] sm:$0xf]
  %v69 = vld [vmem:[%s1 + $0x8] sm:$0xf]
  %v70 = vld [vmem:[%s1 + $0xc] sm:$0xf]
  %v71 = vld [vmem:[%s1 + $0x10] sm:$0xf]
  %v72 = vld [vmem:[%s1 + $0x14] sm:$0xf]
  %v73 = vld [vmem:[%s1 + $0x18] sm:$0xf]
  %v74 = vld [vmem:[%s1 + $0x1c] sm:$0xf]
  %v75 = vld [vmem:[%s1 + $0x20] sm:$0xf]
  %v76 = vld [vmem:[%s1 + $0x24] sm:$0xf]
  %v77 = vld [vmem:[%s1 + $0x28] sm:$0xf]
  %v78 = vld [vmem:[%s1 + $0x2c] sm:$0xf]
  %v79 = vld [vmem:[%s1 + $0x30] sm:$0xf]
  %v80 = vld [vmem:[%s1 + $0x34] sm:$0xf]
  %v81 = vld [vmem:[%s1 + $0x38] sm:$0xf]
  %v82 = vld [vmem:[%s1 + $0x3c] sm:$0xf]
  %v99 = vunpack.c.l.b16 %v51
  %v100 = vunpack.c.l.b16 %v52
  %v101 = vunpack.c.l.b16 %v53
  %v102 = vunpack.c.l.b16 %v54
  %v103 = vunpack.c.l.b16 %v55
  %v104 = vunpack.c.l.b16 %v56
  %v105 = vunpack.c.l.b16 %v57
  %v106 = vunpack.c.l.b16 %v58
  %v107 = vunpack.c.l.b16 %v59
  %v108 = vunpack.c.l.b16 %v60
  %v109 = vunpack.c.l.b16 %v61
  %v110 = vunpack.c.l.b16 %v62
  %v111 = vunpack.c.l.b16 %v63
  %v112 = vunpack.c.l.b16 %v64
  %v113 = vunpack.c.l.b16 %v65
  %v114 = vunpack.c.l.b16 %v66
  %v115 = vpack.c.b16 %v100, %v99
  %v116 = vpack.c.b16 %v102, %v101
  %v117 = vpack.c.b16 %v104, %v103
  %v118 = vpack.c.b16 %v106, %v105
  %v119 = vpack.c.b16 %v108, %v107
  %v120 = vpack.c.b16 %v110, %v109
  %v121 = vpack.c.b16 %v112, %v111
  %v122 = vpack.c.b16 %v114, %v113
  %v147 = vunpack.c.l.b16 %v67
  %v148 = vunpack.c.l.b16 %v68
  %v149 = vunpack.c.l.b16 %v69
  %v150 = vunpack.c.l.b16 %v70
  %v151 = vunpack.c.l.b16 %v71
  %v152 = vunpack.c.l.b16 %v72
  %v153 = vunpack.c.l.b16 %v73
  %v154 = vunpack.c.l.b16 %v74
  %v155 = vunpack.c.l.b16 %v75
  %v156 = vunpack.c.l.b16 %v76
  %v157 = vunpack.c.l.b16 %v77
  %v158 = vunpack.c.l.b16 %v78
  %v159 = vunpack.c.l.b16 %v79
  %v160 = vunpack.c.l.b16 %v80
  %v161 = vunpack.c.l.b16 %v81
  %v162 = vunpack.c.l.b16 %v82
  %v163 = vpack.c.b16 %v148, %v147
  %v164 = vpack.c.b16 %v150, %v149
  %v165 = vpack.c.b16 %v152, %v151
  %v166 = vpack.c.b16 %v154, %v153
  %v167 = vpack.c.b16 %v156, %v155
  %v168 = vpack.c.b16 %v158, %v157
  %v169 = vpack.c.b16 %v160, %v159
  %v170 = vpack.c.b16 %v162, %v161
  %179 = vmatprep.subr.bf16.mxu0 0
  %180 = vmatpush1.bf16.msra.mxu0 %v163
  %181 = vmatprep.subr.bf16.mxu0 0
  %182 = vmatpush1.bf16.msra.mxu0 %v164
  %183 = vmatprep.subr.bf16.mxu0 0
  %184 = vmatpush1.bf16.msra.mxu0 %v165
  %185 = vmatprep.subr.bf16.mxu0 0
  %186 = vmatpush1.bf16.msra.mxu0 %v166
  %187 = vmatprep.subr.bf16.mxu0 0
  %188 = vmatpush1.bf16.msra.mxu0 %v167
  %189 = vmatprep.subr.bf16.mxu0 0
  %190 = vmatpush1.bf16.msra.mxu0 %v168
  %191 = vmatprep.subr.bf16.mxu0 0
  %192 = vmatpush1.bf16.msra.mxu0 %v169
  %193 = vmatprep.subr.bf16.mxu0 0
  %194 = vmatpush1.bf16.msra.mxu0 %v170
  %195 = vmatprep.subr.bf16.mxu0 0
  %196 = vmatpush1.bf16.msra.mxu0 0
  %197 = vmatprep.subr.bf16.mxu0 0
  %198 = vmatpush1.bf16.msra.mxu0 0
  %199 = vmatprep.subr.bf16.mxu0 0
  %200 = vmatpush1.bf16.msra.mxu0 0
  %201 = vmatprep.subr.bf16.mxu0 0
  %202 = vmatpush1.bf16.msra.mxu0 0
  %203 = vmatprep.subr.bf16.mxu0 0
  %204 = vmatpush1.bf16.msra.mxu0 0
  %205 = vmatprep.subr.bf16.mxu0 0
  %206 = vmatpush1.bf16.msra.mxu0 0
  %207 = vmatprep.subr.bf16.mxu0 0
  %208 = vmatpush1.bf16.msra.mxu0 0
  %209 = vmatprep.subr.bf16.mxu0 0
  %210 = vmatpush1.bf16.msra.mxu0 0
  %211 = vmatprep.mubr.bf16.mxu0 0
  %212 = vmatmul.mubr.bf16.gmra.mrb[0].mxu0 %v115
  %v213 = vpop.f32.mrb[0].mxu0
  %v214 = vadd.f32 0.0, %v213
  %v215 = vpop.f32.mrb[0].mxu0
  %v216 = vpop.f32.mrb[0].mxu0
  %v217 = vadd.f32 0.0, %v216
  %v218 = vpop.f32.mrb[0].mxu0
  %219 = vmatprep.mubr.bf16.mxu0 0
  %220 = vmatmul.mubr.bf16.gmra.mrb[0].mxu0 %v116
  %v221 = vpop.f32.mrb[0].mxu0
  %v222 = vadd.f32 0.0, %v221
  %v223 = vpop.f32.mrb[0].mxu0
  %v224 = vpop.f32.mrb[0].mxu0
  %v225 = vadd.f32 0.0, %v224
  %v226 = vpop.f32.mrb[0].mxu0
  %227 = vmatprep.mubr.bf16.mxu0 0
  %228 = vmatmul.mubr.bf16.gmra.mrb[0].mxu0 %v117
  %v229 = vpop.f32.mrb[0].mxu0
  %v230 = vadd.f32 0.0, %v229
  %v231 = vpop.f32.mrb[0].mxu0
  %v232 = vpop.f32.mrb[0].mxu0
  %v233 = vadd.f32 0.0, %v232
  %v234 = vpop.f32.mrb[0].mxu0
  %235 = vmatprep.mubr.bf16.mxu0 0
  %236 = vmatmul.mubr.bf16.gmra.mrb[0].mxu0 %v118
  %v237 = vpop.f32.mrb[0].mxu0
  %v238 = vadd.f32 0.0, %v237
  %v239 = vpop.f32.mrb[0].mxu0
  %v240 = vpop.f32.mrb[0].mxu0
  %v241 = vadd.f32 0.0, %v240
  %v242 = vpop.f32.mrb[0].mxu0
  %243 = vmatprep.mubr.bf16.mxu0 0
  %244 = vmatmul.mubr.bf16.gmra.mrb[0].mxu0 %v119
  %v245 = vpop.f32.mrb[0].mxu0
  %v246 = vadd.f32 0.0, %v245
  %v247 = vpop.f32.mrb[0].mxu0
  %v248 = vpop.f32.mrb[0].mxu0
  %v249 = vadd.f32 0.0, %v248
  %v250 = vpop.f32.mrb[0].mxu0
  %251 = vmatprep.mubr.bf16.mxu0 0
  %252 = vmatmul.mubr.bf16.gmra.mrb[0].mxu0 %v120
  %v253 = vpop.f32.mrb[0].mxu0
  %v254 = vadd.f32 0.0, %v253
  %v255 = vpop.f32.mrb[0].mxu0
  %v256 = vpop.f32.mrb[0].mxu0
  %v257 = vadd.f32 0.0, %v256
  %v258 = vpop.f32.mrb[0].mxu0
  %259 = vmatprep.mubr.bf16.mxu0 0
  %260 = vmatmul.mubr.bf16.gmra.mrb[0].mxu0 %v121
  %v261 = vpop.f32.mrb[0].mxu0
  %v262 = vadd.f32 0.0, %v261
  %v263 = vpop.f32.mrb[0].mxu0
  %v264 = vpop.f32.mrb[0].mxu0
  %v265 = vadd.f32 0.0, %v264
  %v266 = vpop.f32.mrb[0].mxu0
  %267 = vmatprep.mubr.bf16.mxu0 0
  %268 = vmatmul.mubr.bf16.gmra.mrb[0].mxu0 %v122
  %v269 = vpop.f32.mrb[0].mxu0
  %v270 = vadd.f32 0.0, %v269
  %v271 = vpop.f32.mrb[0].mxu0
  %v272 = vpop.f32.mrb[0].mxu0
  %v273 = vadd.f32 0.0, %v272
  %v274 = vpop.f32.mrb[0].mxu0
  %275 = vdwg.mxu0
  %v276 = vadd.f32 %v35, %v214
  %v277 = vadd.f32 %v36, %v217
  %v278 = vadd.f32 %v37, %v222
  %v279 = vadd.f32 %v38, %v225
  %v280 = vadd.f32 %v39, %v230
  %v281 = vadd.f32 %v40, %v233
  %v282 = vadd.f32 %v41, %v238
  %v283 = vadd.f32 %v42, %v241
  %v284 = vadd.f32 %v43, %v246
  %v285 = vadd.f32 %v44, %v249
  %v286 = vadd.f32 %v45, %v254
  %v287 = vadd.f32 %v46, %v257
  %v288 = vadd.f32 %v47, %v262
  %v289 = vadd.f32 %v48, %v265
  %v290 = vadd.f32 %v49, %v270
  %v291 = vadd.f32 %v50, %v273
  %292 = vst [vmem:[#allocation2] sm:$0xff] %v276
  %293 = vst [vmem:[#allocation2 + $0x8] sm:$0xff] %v277
  %294 = vst [vmem:[#allocation2 + $0x10] sm:$0xff] %v278
  %295 = vst [vmem:[#allocation2 + $0x18] sm:$0xff] %v279
  %296 = vst [vmem:[#allocation2 + $0x20] sm:$0xff] %v280
  %297 = vst [vmem:[#allocation2 + $0x28] sm:$0xff] %v281
  %298 = vst [vmem:[#allocation2 + $0x30] sm:$0xff] %v282
  %299 = vst [vmem:[#allocation2 + $0x38] sm:$0xff] %v283
  %300 = vst [vmem:[#allocation2 + $0x40] sm:$0xff] %v284
  %301 = vst [vmem:[#allocation2 + $0x48] sm:$0xff] %v285
  %302 = vst [vmem:[#allocation2 + $0x50] sm:$0xff] %v286
  %303 = vst [vmem:[#allocation2 + $0x58] sm:$0xff] %v287
  %304 = vst [vmem:[#allocation2 + $0x60] sm:$0xff] %v288
  %305 = vst [vmem:[#allocation2 + $0x68] sm:$0xff] %v289
  %306 = vst [vmem:[#allocation2 + $0x70] sm:$0xff] %v290
  %307 = vst [vmem:[#allocation2 + $0x78] sm:$0xff] %v291
  // Predicated region
  $region18: #{gcn_forward.2} parent=0 // pred_check
    %p308 = pneg %p15
  $region19: #{gcn_forward.2} parent=0 // pred_check_branch
    %310 = sbr.rel (%p308) target = $region21
  $region20: #{gcn_forward.2} parent=0 // pred_region
    %v311 = vld [vmem:[#allocation2] sm:$0xff]
    %v312 = vld [vmem:[#allocation2 + $0x8] sm:$0xff]
    %v313 = vld [vmem:[#allocation2 + $0x10] sm:$0xff]
    %v314 = vld [vmem:[#allocation2 + $0x18] sm:$0xff]
    %v315 = vld [vmem:[#allocation2 + $0x20] sm:$0xff]
    %v316 = vld [vmem:[#allocation2 + $0x28] sm:$0xff]
    %v317 = vld [vmem:[#allocation2 + $0x30] sm:$0xff]
    %v318 = vld [vmem:[#allocation2 + $0x38] sm:$0xff]
    %v319 = vld [vmem:[#allocation2 + $0x40] sm:$0xff]
    %v320 = vld [vmem:[#allocation2 + $0x48] sm:$0xff]
    %v321 = vld [vmem:[#allocation2 + $0x50] sm:$0xff]
    %v322 = vld [vmem:[#allocation2 + $0x58] sm:$0xff]
    %v323 = vld [vmem:[#allocation2 + $0x60] sm:$0xff]
    %v324 = vld [vmem:[#allocation2 + $0x68] sm:$0xff]
    %v325 = vld [vmem:[#allocation2 + $0x70] sm:$0xff]
    %v326 = vld [vmem:[#allocation2 + $0x78] sm:$0xff]
    %v327 = vld [vmem:[%s2] sm:$0x1]
    %v329 = vlaneseq
    %v330 = vshrl.u32 %v329, 7
    %v331 = vsub.s32 0, %v330
    %v332 = vrot.slane %v327, %v331
    %v334 = vadd.f32 %v311, %v332
    %v335 = vadd.f32 %v312, %v332
    %v336 = vadd.f32 %v313, %v332
    %v337 = vadd.f32 %v314, %v332
    %v338 = vadd.f32 %v315, %v332
    %v339 = vadd.f32 %v316, %v332
    %v340 = vadd.f32 %v317, %v332
    %v341 = vadd.f32 %v318, %v332
    %v342 = vadd.f32 %v319, %v332
    %v343 = vadd.f32 %v320, %v332
    %v344 = vadd.f32 %v321, %v332
    %v345 = vadd.f32 %v322, %v332
    %v346 = vadd.f32 %v323, %v332
    %v347 = vadd.f32 %v324, %v332
    %v348 = vadd.f32 %v325, %v332
    %v349 = vadd.f32 %v326, %v332
    %vm350 = vcmp.ge.f32.partialorder %v334, 0.0
    %vm351 = vcmp.ge.f32.partialorder %v335, 0.0
    %vm352 = vcmp.ge.f32.partialorder %v336, 0.0
    %vm353 = vcmp.ge.f32.partialorder %v337, 0.0
    %vm354 = vcmp.ge.f32.partialorder %v338, 0.0
    %vm355 = vcmp.ge.f32.partialorder %v339, 0.0
    %vm356 = vcmp.ge.f32.partialorder %v340, 0.0
    %vm357 = vcmp.ge.f32.partialorder %v341, 0.0
    %vm358 = vcmp.ge.f32.partialorder %v342, 0.0
    %vm359 = vcmp.ge.f32.partialorder %v343, 0.0
    %vm360 = vcmp.ge.f32.partialorder %v344, 0.0
    %vm361 = vcmp.ge.f32.partialorder %v345, 0.0
    %vm362 = vcmp.ge.f32.partialorder %v346, 0.0
    %vm363 = vcmp.ge.f32.partialorder %v347, 0.0
    %vm364 = vcmp.ge.f32.partialorder %v348, 0.0
    %vm365 = vcmp.ge.f32.partialorder %v349, 0.0
    %v366 = vmul.f32 %v334, 0.2
    %v367 = vmul.f32 %v335, 0.2
    %v368 = vmul.f32 %v336, 0.2
    %v369 = vmul.f32 %v337, 0.2
    %v370 = vmul.f32 %v338, 0.2
    %v371 = vmul.f32 %v339, 0.2
    %v372 = vmul.f32 %v340, 0.2
    %v373 = vmul.f32 %v341, 0.2
    %v374 = vmul.f32 %v342, 0.2
    %v375 = vmul.f32 %v343, 0.2
    %v376 = vmul.f32 %v344, 0.2
    %v377 = vmul.f32 %v345, 0.2
    %v378 = vmul.f32 %v346, 0.2
    %v379 = vmul.f32 %v347, 0.2
    %v380 = vmul.f32 %v348, 0.2
    %v381 = vmul.f32 %v349, 0.2
    %v382 = vsel %vm350, %v334, %v366
    %v383 = vsel %vm351, %v335, %v367
    %v384 = vsel %vm352, %v336, %v368
    %v385 = vsel %vm353, %v337, %v369
    %v386 = vsel %vm354, %v338, %v370
    %v387 = vsel %vm355, %v339, %v371
    %v388 = vsel %vm356, %v340, %v372
    %v389 = vsel %vm357, %v341, %v373
    %v390 = vsel %vm358, %v342, %v374
    %v391 = vsel %vm359, %v343, %v375
    %v392 = vsel %vm360, %v344, %v376
    %v393 = vsel %vm361, %v345, %v377
    %v394 = vsel %vm362, %v346, %v378
    %v395 = vsel %vm363, %v347, %v379
    %v396 = vsel %vm364, %v348, %v380
    %v397 = vsel %vm365, %v349, %v381
    %v398 = vpack.c.bf16 %v383, %v382
    %v399 = vpack.c.bf16 %v385, %v384
    %v400 = vpack.c.bf16 %v387, %v386
    %v401 = vpack.c.bf16 %v389, %v388
    %v402 = vpack.c.bf16 %v391, %v390
    %v403 = vpack.c.bf16 %v393, %v392
    %v404 = vpack.c.bf16 %v395, %v394
    %v405 = vpack.c.bf16 %v397, %v396
    %v414 = vunpack.c.l.b16 %v398
    %v415 = vunpack.c.h.b16 %v398
    %v416 = vunpack.c.l.b16 %v399
    %v417 = vunpack.c.h.b16 %v399
    %v418 = vunpack.c.l.b16 %v400
    %v419 = vunpack.c.h.b16 %v400
    %v420 = vunpack.c.l.b16 %v401
    %v421 = vunpack.c.h.b16 %v401
    %v422 = vunpack.c.l.b16 %v402
    %v423 = vunpack.c.h.b16 %v402
    %v424 = vunpack.c.l.b16 %v403
    %v425 = vunpack.c.h.b16 %v403
    %v426 = vunpack.c.l.b16 %v404
    %v427 = vunpack.c.h.b16 %v404
    %v428 = vunpack.c.l.b16 %v405
    %v429 = vunpack.c.h.b16 %v405
    %v430 = vpack.c.b16 %v414, %v414
    %v431 = vpack.c.b16 %v415, %v415
    %v432 = vpack.c.b16 %v416, %v416
    %v433 = vpack.c.b16 %v417, %v417
    %v434 = vpack.c.b16 %v418, %v418
    %v435 = vpack.c.b16 %v419, %v419
    %v436 = vpack.c.b16 %v420, %v420
    %v437 = vpack.c.b16 %v421, %v421
    %v438 = vpack.c.b16 %v422, %v422
    %v439 = vpack.c.b16 %v423, %v423
    %v440 = vpack.c.b16 %v424, %v424
    %v441 = vpack.c.b16 %v425, %v425
    %v442 = vpack.c.b16 %v426, %v426
    %v443 = vpack.c.b16 %v427, %v427
    %v444 = vpack.c.b16 %v428, %v428
    %v445 = vpack.c.b16 %v429, %v429
    %462 = vst [vmem:[%s3] sm:$0xf] %v430
    %463 = vst [vmem:[%s3 + $0x4] sm:$0xf] %v431
    %464 = vst [vmem:[%s3 + $0x8] sm:$0xf] %v432
    %465 = vst [vmem:[%s3 + $0xc] sm:$0xf] %v433
    %466 = vst [vmem:[%s3 + $0x10] sm:$0xf] %v434
    %467 = vst [vmem:[%s3 + $0x14] sm:$0xf] %v435
    %468 = vst [vmem:[%s3 + $0x18] sm:$0xf] %v436
    %469 = vst [vmem:[%s3 + $0x1c] sm:$0xf] %v437
    %470 = vst [vmem:[%s3 + $0x20] sm:$0xf] %v438
    %471 = vst [vmem:[%s3 + $0x24] sm:$0xf] %v439
    %472 = vst [vmem:[%s3 + $0x28] sm:$0xf] %v440
    %473 = vst [vmem:[%s3 + $0x2c] sm:$0xf] %v441
    %474 = vst [vmem:[%s3 + $0x30] sm:$0xf] %v442
    %475 = vst [vmem:[%s3 + $0x34] sm:$0xf] %v443
    %476 = vst [vmem:[%s3 + $0x38] sm:$0xf] %v444
    %477 = vst [vmem:[%s3 + $0x3c] sm:$0xf] %v445
  $region21: #{gcn_forward.2} parent=0 // pred_fallthru
    _
  // Predicated region
  $region22: #{gcn_forward.2} parent=0 // pred_check
    _
  $region23: #{gcn_forward.2} parent=0 // pred_check_branch
    %479 = sbr.rel (0) target = $region25
  $region24: #{gcn_forward.2} parent=0 // pred_region
    _
  $region25: #{gcn_forward.2} parent=0 // pred_fallthru
    _
  // Predicated region
  $region26: #{gcn_forward.2} parent=0 // pred_check
    _
  $region27: #{gcn_forward.2} parent=0 // pred_check_branch
    %481 = sbr.rel (0) target = $region29
  $region28: #{gcn_forward.2} parent=0 // pred_region
    _
  $region29: #{gcn_forward.2} parent=0 // pred_fallthru
    _

// kernel: gcn_forward.3
$region0: #{gcn_forward.3}
  #allocation0 [shape = 'u32[]', space=smem, size = 0x4, offset = 0x4, fixed_abs, tag = 'smem constant byte address 0x4 - core index']
  #allocation1 [shape = 'u32[144,128]{1,0:T(1,128)}', space=vmem, size = 0x12000, scoped, tag = 'internal scratch']
  #allocation2 [shape = 'f32[128,128]{1,0:T(8,128)}', space=vmem, size = 0x10000, scoped, tag = 'scratch operand']
  #allocation3 [shape = 'f32[8,128]{1,0:T(8,128)}', space=vmem, size = 0x1000, scoped, tag = 'scratch operand']
  %s0 = inlined_call_operand.vmem [shape: bf16[128,128], index: 0, kind: input, shape index: {}]
  %s1 = inlined_call_operand.vmem [shape: bf16[128,128], index: 1, kind: input, shape index: {}]
  %s2 = inlined_call_operand.vmem [shape: bf16[128,128], index: 2, kind: input, shape index: {}]
  %s3 = inlined_call_operand.vmem [shape: f32[1,128], index: 3, kind: input, shape index: {}]
  %s4 = inlined_call_operand.vmem [shape: bf16[8,128], index: 4, kind: input, shape index: {}]
  %s5 = inlined_call_operand.vmem [shape: bf16[128,128], index: 5, kind: input, shape index: {}]
  %s6 = inlined_call_operand.vmem [shape: f32[1,128], index: 6, kind: input, shape index: {}]
  %s7 = inlined_call_operand.vmem [shape: f32[8,128], index: 7, kind: output, shape index: {}]
  %s8 = sld [smem:[#allocation0]]
  $region54: #{gcn_forward.3} parent=0
    _
  %s10 = ssub.s32 1, %s8
  %s11 = scalar_select 0, %s10, %s8
  // Predicated region
  $region2: #{gcn_forward.3} parent=0 // pred_check
    _
  $region3: #{gcn_forward.3} parent=0 // pred_check_branch
    %13 = sbr.rel (0) target = $region5
  $region4: #{gcn_forward.3} parent=0 // pred_region
    _
  $region5: #{gcn_forward.3} parent=0 // pred_fallthru
    _
  // Predicated region
  $region6: #{gcn_forward.3} parent=0 // pred_check
    _
  $region7: #{gcn_forward.3} parent=0 // pred_check_branch
    %15 = sbr.rel (0) target = $region9
  $region8: #{gcn_forward.3} parent=0 // pred_region
    _
  $region9: #{gcn_forward.3} parent=0 // pred_fallthru
    _
  // Predicated region
  $region10: #{gcn_forward.3} parent=0 // pred_check
    _
  $region11: #{gcn_forward.3} parent=0 // pred_check_branch
    %17 = sbr.rel (0) target = $region13
  $region12: #{gcn_forward.3} parent=0 // pred_region
    _
  $region13: #{gcn_forward.3} parent=0 // pred_fallthru
    _
  // Predicated region
  $region14: #{gcn_forward.3} parent=0 // pred_check
    _
  $region15: #{gcn_forward.3} parent=0 // pred_check_branch
    %19 = sbr.rel (0) target = $region17
  $region16: #{gcn_forward.3} parent=0 // pred_region
    _
  $region17: #{gcn_forward.3} parent=0 // pred_fallthru
    _
  // Predicated region
  $region18: #{gcn_forward.3} parent=0 // pred_check
    _
  $region19: #{gcn_forward.3} parent=0 // pred_check_branch
    %21 = sbr.rel (0) target = $region21
  $region20: #{gcn_forward.3} parent=0 // pred_region
    _
  $region21: #{gcn_forward.3} parent=0 // pred_fallthru
    _
  // Predicated region
  $region22: #{gcn_forward.3} parent=0 // pred_check
    _
  $region23: #{gcn_forward.3} parent=0 // pred_check_branch
    %23 = sbr.rel (0) target = $region25
  $region24: #{gcn_forward.3} parent=0 // pred_region
    _
  $region25: #{gcn_forward.3} parent=0 // pred_fallthru
    _
  // Predicated region
  $region26: #{gcn_forward.3} parent=0 // pred_check
    _
  $region27: #{gcn_forward.3} parent=0 // pred_check_branch
    %25 = sbr.rel (0) target = $region29
  $region28: #{gcn_forward.3} parent=0 // pred_region
    _
  $region29: #{gcn_forward.3} parent=0 // pred_fallthru
    _
  %p27 = scmp.eq.s32.totalorder 0, 0
  %p28 = scmp.eq.s32.totalorder 0, 0
  %p29 = pnand %p27, %p28
  %p30 = pneg %p29
  // Predicated region
  $region30: #{gcn_forward.3} parent=0 // pred_check
    _
  $region31: #{gcn_forward.3} parent=0 // pred_check_branch
    %32 = sbr.rel (%p29) target = $region33
  $region32: #{gcn_forward.3} parent=0 // pred_region
    %33 = vst [vmem:[#allocation3] sm:$0xff] 0.0
  $region33: #{gcn_forward.3} parent=0 // pred_fallthru
    _
  // Predicated region
  $region34: #{gcn_forward.3} parent=0 // pred_check
    %p34 = pneg %p28
  $region35: #{gcn_forward.3} parent=0 // pred_check_branch
    %36 = sbr.rel (%p34) target = $region37
  $region36: #{gcn_forward.3} parent=0 // pred_region
    %37 = vst [vmem:[#allocation2] sm:$0xff] 0.0
    %38 = vst [vmem:[#allocation2 + $0x8] sm:$0xff] 0.0
    %39 = vst [vmem:[#allocation2 + $0x10] sm:$0xff] 0.0
    %40 = vst [vmem:[#allocation2 + $0x18] sm:$0xff] 0.0
    %41 = vst [vmem:[#allocation2 + $0x20] sm:$0xff] 0.0
    %42 = vst [vmem:[#allocation2 + $0x28] sm:$0xff] 0.0
    %43 = vst [vmem:[#allocation2 + $0x30] sm:$0xff] 0.0
    %44 = vst [vmem:[#allocation2 + $0x38] sm:$0xff] 0.0
    %45 = vst [vmem:[#allocation2 + $0x40] sm:$0xff] 0.0
    %46 = vst [vmem:[#allocation2 + $0x48] sm:$0xff] 0.0
    %47 = vst [vmem:[#allocation2 + $0x50] sm:$0xff] 0.0
    %48 = vst [vmem:[#allocation2 + $0x58] sm:$0xff] 0.0
    %49 = vst [vmem:[#allocation2 + $0x60] sm:$0xff] 0.0
    %50 = vst [vmem:[#allocation2 + $0x68] sm:$0xff] 0.0
    %51 = vst [vmem:[#allocation2 + $0x70] sm:$0xff] 0.0
    %52 = vst [vmem:[#allocation2 + $0x78] sm:$0xff] 0.0
  $region37: #{gcn_forward.3} parent=0 // pred_fallthru
    _
  %v53 = vld [vmem:[#allocation2] sm:$0xff]
  %v54 = vld [vmem:[#allocation2 + $0x8] sm:$0xff]
  %v55 = vld [vmem:[#allocation2 + $0x10] sm:$0xff]
  %v56 = vld [vmem:[#allocation2 + $0x18] sm:$0xff]
  %v57 = vld [vmem:[#allocation2 + $0x20] sm:$0xff]
  %v58 = vld [vmem:[#allocation2 + $0x28] sm:$0xff]
  %v59 = vld [vmem:[#allocation2 + $0x30] sm:$0xff]
  %v60 = vld [vmem:[#allocation2 + $0x38] sm:$0xff]
  %v61 = vld [vmem:[#allocation2 + $0x40] sm:$0xff]
  %v62 = vld [vmem:[#allocation2 + $0x48] sm:$0xff]
  %v63 = vld [vmem:[#allocation2 + $0x50] sm:$0xff]
  %v64 = vld [vmem:[#allocation2 + $0x58] sm:$0xff]
  %v65 = vld [vmem:[#allocation2 + $0x60] sm:$0xff]
  %v66 = vld [vmem:[#allocation2 + $0x68] sm:$0xff]
  %v67 = vld [vmem:[#allocation2 + $0x70] sm:$0xff]
  %v68 = vld [vmem:[#allocation2 + $0x78] sm:$0xff]
  %v69 = vld [vmem:[%s0] sm:$0xf]
  %v70 = vld [vmem:[%s0 + $0x4] sm:$0xf]
  %v71 = vld [vmem:[%s0 + $0x8] sm:$0xf]
  %v72 = vld [vmem:[%s0 + $0xc] sm:$0xf]
  %v73 = vld [vmem:[%s0 + $0x10] sm:$0xf]
  %v74 = vld [vmem:[%s0 + $0x14] sm:$0xf]
  %v75 = vld [vmem:[%s0 + $0x18] sm:$0xf]
  %v76 = vld [vmem:[%s0 + $0x1c] sm:$0xf]
  %v77 = vld [vmem:[%s0 + $0x20] sm:$0xf]
  %v78 = vld [vmem:[%s0 + $0x24] sm:$0xf]
  %v79 = vld [vmem:[%s0 + $0x28] sm:$0xf]
  %v80 = vld [vmem:[%s0 + $0x2c] sm:$0xf]
  %v81 = vld [vmem:[%s0 + $0x30] sm:$0xf]
  %v82 = vld [vmem:[%s0 + $0x34] sm:$0xf]
  %v83 = vld [vmem:[%s0 + $0x38] sm:$0xf]
  %v84 = vld [vmem:[%s0 + $0x3c] sm:$0xf]
  %v85 = vld [vmem:[%s1] sm:$0xf]
  %v86 = vld [vmem:[%s1 + $0x4] sm:$0xf]
  %v87 = vld [vmem:[%s1 + $0x8] sm:$0xf]
  %v88 = vld [vmem:[%s1 + $0xc] sm:$0xf]
  %v89 = vld [vmem:[%s1 + $0x10] sm:$0xf]
  %v90 = vld [vmem:[%s1 + $0x14] sm:$0xf]
  %v91 = vld [vmem:[%s1 + $0x18] sm:$0xf]
  %v92 = vld [vmem:[%s1 + $0x1c] sm:$0xf]
  %v93 = vld [vmem:[%s1 + $0x20] sm:$0xf]
  %v94 = vld [vmem:[%s1 + $0x24] sm:$0xf]
  %v95 = vld [vmem:[%s1 + $0x28] sm:$0xf]
  %v96 = vld [vmem:[%s1 + $0x2c] sm:$0xf]
  %v97 = vld [vmem:[%s1 + $0x30] sm:$0xf]
  %v98 = vld [vmem:[%s1 + $0x34] sm:$0xf]
  %v99 = vld [vmem:[%s1 + $0x38] sm:$0xf]
  %v100 = vld [vmem:[%s1 + $0x3c] sm:$0xf]
  %v117 = vunpack.c.l.b16 %v69
  %v118 = vunpack.c.l.b16 %v70
  %v119 = vunpack.c.l.b16 %v71
  %v120 = vunpack.c.l.b16 %v72
  %v121 = vunpack.c.l.b16 %v73
  %v122 = vunpack.c.l.b16 %v74
  %v123 = vunpack.c.l.b16 %v75
  %v124 = vunpack.c.l.b16 %v76
  %v125 = vunpack.c.l.b16 %v77
  %v126 = vunpack.c.l.b16 %v78
  %v127 = vunpack.c.l.b16 %v79
  %v128 = vunpack.c.l.b16 %v80
  %v129 = vunpack.c.l.b16 %v81
  %v130 = vunpack.c.l.b16 %v82
  %v131 = vunpack.c.l.b16 %v83
  %v132 = vunpack.c.l.b16 %v84
  %v133 = vpack.c.b16 %v118, %v117
  %v134 = vpack.c.b16 %v120, %v119
  %v135 = vpack.c.b16 %v122, %v121
  %v136 = vpack.c.b16 %v124, %v123
  %v137 = vpack.c.b16 %v126, %v125
  %v138 = vpack.c.b16 %v128, %v127
  %v139 = vpack.c.b16 %v130, %v129
  %v140 = vpack.c.b16 %v132, %v131
  %v165 = vunpack.c.l.b16 %v85
  %v166 = vunpack.c.l.b16 %v86
  %v167 = vunpack.c.l.b16 %v87
  %v168 = vunpack.c.l.b16 %v88
  %v169 = vunpack.c.l.b16 %v89
  %v170 = vunpack.c.l.b16 %v90
  %v171 = vunpack.c.l.b16 %v91
  %v172 = vunpack.c.l.b16 %v92
  %v173 = vunpack.c.l.b16 %v93
  %v174 = vunpack.c.l.b16 %v94
  %v175 = vunpack.c.l.b16 %v95
  %v176 = vunpack.c.l.b16 %v96
  %v177 = vunpack.c.l.b16 %v97
  %v178 = vunpack.c.l.b16 %v98
  %v179 = vunpack.c.l.b16 %v99
  %v180 = vunpack.c.l.b16 %v100
  %v181 = vpack.c.b16 %v166, %v165
  %v182 = vpack.c.b16 %v168, %v167
  %v183 = vpack.c.b16 %v170, %v169
  %v184 = vpack.c.b16 %v172, %v171
  %v185 = vpack.c.b16 %v174, %v173
  %v186 = vpack.c.b16 %v176, %v175
  %v187 = vpack.c.b16 %v178, %v177
  %v188 = vpack.c.b16 %v180, %v179
  %197 = vmatprep.subr.bf16.mxu0 0
  %198 = vmatpush1.bf16.msra.mxu0 %v181
  %199 = vmatprep.subr.bf16.mxu0 0
  %200 = vmatpush1.bf16.msra.mxu0 %v182
  %201 = vmatprep.subr.bf16.mxu0 0
  %202 = vmatpush1.bf16.msra.mxu0 %v183
  %203 = vmatprep.subr.bf16.mxu0 0
  %204 = vmatpush1.bf16.msra.mxu0 %v184
  %205 = vmatprep.subr.bf16.mxu0 0
  %206 = vmatpush1.bf16.msra.mxu0 %v185
  %207 = vmatprep.subr.bf16.mxu0 0
  %208 = vmatpush1.bf16.msra.mxu0 %v186
  %209 = vmatprep.subr.bf16.mxu0 0
  %210 = vmatpush1.bf16.msra.mxu0 %v187
  %211 = vmatprep.subr.bf16.mxu0 0
  %212 = vmatpush1.bf16.msra.mxu0 %v188
  %213 = vmatprep.subr.bf16.mxu0 0
  %214 = vmatpush1.bf16.msra.mxu0 0
  %215 = vmatprep.subr.bf16.mxu0 0
  %216 = vmatpush1.bf16.msra.mxu0 0
  %217 = vmatprep.subr.bf16.mxu0 0
  %218 = vmatpush1.bf16.msra.mxu0 0
  %219 = vmatprep.subr.bf16.mxu0 0
  %220 = vmatpush1.bf16.msra.mxu0 0
  %221 = vmatprep.subr.bf16.mxu0 0
  %222 = vmatpush1.bf16.msra.mxu0 0
  %223 = vmatprep.subr.bf16.mxu0 0
  %224 = vmatpush1.bf16.msra.mxu0 0
  %225 = vmatprep.subr.bf16.mxu0 0
  %226 = vmatpush1.bf16.msra.mxu0 0
  %227 = vmatprep.subr.bf16.mxu0 0
  %228 = vmatpush1.bf16.msra.mxu0 0
  %229 = vmatprep.mubr.bf16.mxu0 0
  %230 = vmatmul.mubr.bf16.gmra.mrb[0].mxu0 %v133
  %v231 = vpop.f32.mrb[0].mxu0
  %v232 = vadd.f32 0.0, %v231
  %v233 = vpop.f32.mrb[0].mxu0
  %v234 = vpop.f32.mrb[0].mxu0
  %v235 = vadd.f32 0.0, %v234
  %v236 = vpop.f32.mrb[0].mxu0
  %237 = vmatprep.mubr.bf16.mxu0 0
  %238 = vmatmul.mubr.bf16.gmra.mrb[0].mxu0 %v134
  %v239 = vpop.f32.mrb[0].mxu0
  %v240 = vadd.f32 0.0, %v239
  %v241 = vpop.f32.mrb[0].mxu0
  %v242 = vpop.f32.mrb[0].mxu0
  %v243 = vadd.f32 0.0, %v242
  %v244 = vpop.f32.mrb[0].mxu0
  %245 = vmatprep.mubr.bf16.mxu0 0
  %246 = vmatmul.mubr.bf16.gmra.mrb[0].mxu0 %v135
  %v247 = vpop.f32.mrb[0].mxu0
  %v248 = vadd.f32 0.0, %v247
  %v249 = vpop.f32.mrb[0].mxu0
  %v250 = vpop.f32.mrb[0].mxu0
  %v251 = vadd.f32 0.0, %v250
  %v252 = vpop.f32.mrb[0].mxu0
  %253 = vmatprep.mubr.bf16.mxu0 0
  %254 = vmatmul.mubr.bf16.gmra.mrb[0].mxu0 %v136
  %v255 = vpop.f32.mrb[0].mxu0
  %v256 = vadd.f32 0.0, %v255
  %v257 = vpop.f32.mrb[0].mxu0
  %v258 = vpop.f32.mrb[0].mxu0
  %v259 = vadd.f32 0.0, %v258
  %v260 = vpop.f32.mrb[0].mxu0
  %261 = vmatprep.mubr.bf16.mxu0 0
  %262 = vmatmul.mubr.bf16.gmra.mrb[0].mxu0 %v137
  %v263 = vpop.f32.mrb[0].mxu0
  %v264 = vadd.f32 0.0, %v263
  %v265 = vpop.f32.mrb[0].mxu0
  %v266 = vpop.f32.mrb[0].mxu0
  %v267 = vadd.f32 0.0, %v266
  %v268 = vpop.f32.mrb[0].mxu0
  %269 = vmatprep.mubr.bf16.mxu0 0
  %270 = vmatmul.mubr.bf16.gmra.mrb[0].mxu0 %v138
  %v271 = vpop.f32.mrb[0].mxu0
  %v272 = vadd.f32 0.0, %v271
  %v273 = vpop.f32.mrb[0].mxu0
  %v274 = vpop.f32.mrb[0].mxu0
  %v275 = vadd.f32 0.0, %v274
  %v276 = vpop.f32.mrb[0].mxu0
  %277 = vmatprep.mubr.bf16.mxu0 0
  %278 = vmatmul.mubr.bf16.gmra.mrb[0].mxu0 %v139
  %v279 = vpop.f32.mrb[0].mxu0
  %v280 = vadd.f32 0.0, %v279
  %v281 = vpop.f32.mrb[0].mxu0
  %v282 = vpop.f32.mrb[0].mxu0
  %v283 = vadd.f32 0.0, %v282
  %v284 = vpop.f32.mrb[0].mxu0
  %285 = vmatprep.mubr.bf16.mxu0 0
  %286 = vmatmul.mubr.bf16.gmra.mrb[0].mxu0 %v140
  %v287 = vpop.f32.mrb[0].mxu0
  %v288 = vadd.f32 0.0, %v287
  %v289 = vpop.f32.mrb[0].mxu0
  %v290 = vpop.f32.mrb[0].mxu0
  %v291 = vadd.f32 0.0, %v290
  %v292 = vpop.f32.mrb[0].mxu0
  %293 = vdwg.mxu0
  %v294 = vadd.f32 %v53, %v232
  %v295 = vadd.f32 %v54, %v235
  %v296 = vadd.f32 %v55, %v240
  %v297 = vadd.f32 %v56, %v243
  %v298 = vadd.f32 %v57, %v248
  %v299 = vadd.f32 %v58, %v251
  %v300 = vadd.f32 %v59, %v256
  %v301 = vadd.f32 %v60, %v259
  %v302 = vadd.f32 %v61, %v264
  %v303 = vadd.f32 %v62, %v267
  %v304 = vadd.f32 %v63, %v272
  %v305 = vadd.f32 %v64, %v275
  %v306 = vadd.f32 %v65, %v280
  %v307 = vadd.f32 %v66, %v283
  %v308 = vadd.f32 %v67, %v288
  %v309 = vadd.f32 %v68, %v291
  %310 = vst [vmem:[#allocation2] sm:$0xff] %v294
  %311 = vst [vmem:[#allocation2 + $0x8] sm:$0xff] %v295
  %312 = vst [vmem:[#allocation2 + $0x10] sm:$0xff] %v296
  %313 = vst [vmem:[#allocation2 + $0x18] sm:$0xff] %v297
  %314 = vst [vmem:[#allocation2 + $0x20] sm:$0xff] %v298
  %315 = vst [vmem:[#allocation2 + $0x28] sm:$0xff] %v299
  %316 = vst [vmem:[#allocation2 + $0x30] sm:$0xff] %v300
  %317 = vst [vmem:[#allocation2 + $0x38] sm:$0xff] %v301
  %318 = vst [vmem:[#allocation2 + $0x40] sm:$0xff] %v302
  %319 = vst [vmem:[#allocation2 + $0x48] sm:$0xff] %v303
  %320 = vst [vmem:[#allocation2 + $0x50] sm:$0xff] %v304
  %321 = vst [vmem:[#allocation2 + $0x58] sm:$0xff] %v305
  %322 = vst [vmem:[#allocation2 + $0x60] sm:$0xff] %v306
  %323 = vst [vmem:[#allocation2 + $0x68] sm:$0xff] %v307
  %324 = vst [vmem:[#allocation2 + $0x70] sm:$0xff] %v308
  %325 = vst [vmem:[#allocation2 + $0x78] sm:$0xff] %v309
  // Predicated region
  $region38: #{gcn_forward.3} parent=0 // pred_check
    %p326 = pneg %p28
  $region39: #{gcn_forward.3} parent=0 // pred_check_branch
    %328 = sbr.rel (%p326) target = $region41
  $region40: #{gcn_forward.3} parent=0 // pred_region
    %v329 = vld [vmem:[#allocation2] sm:$0xff]
    %v330 = vld [vmem:[#allocation2 + $0x8] sm:$0xff]
    %v331 = vld [vmem:[#allocation2 + $0x10] sm:$0xff]
    %v332 = vld [vmem:[#allocation2 + $0x18] sm:$0xff]
    %v333 = vld [vmem:[#allocation2 + $0x20] sm:$0xff]
    %v334 = vld [vmem:[#allocation2 + $0x28] sm:$0xff]
    %v335 = vld [vmem:[#allocation2 + $0x30] sm:$0xff]
    %v336 = vld [vmem:[#allocation2 + $0x38] sm:$0xff]
    %v337 = vld [vmem:[#allocation2 + $0x40] sm:$0xff]
    %v338 = vld [vmem:[#allocation2 + $0x48] sm:$0xff]
    %v339 = vld [vmem:[#allocation2 + $0x50] sm:$0xff]
    %v340 = vld [vmem:[#allocation2 + $0x58] sm:$0xff]
    %v341 = vld [vmem:[#allocation2 + $0x60] sm:$0xff]
    %v342 = vld [vmem:[#allocation2 + $0x68] sm:$0xff]
    %v343 = vld [vmem:[#allocation2 + $0x70] sm:$0xff]
    %v344 = vld [vmem:[#allocation2 + $0x78] sm:$0xff]
    %v345 = vpack.c.bf16 %v330, %v329
    %v346 = vpack.c.bf16 %v332, %v331
    %v347 = vpack.c.bf16 %v334, %v333
    %v348 = vpack.c.bf16 %v336, %v335
    %v349 = vpack.c.bf16 %v338, %v337
    %v350 = vpack.c.bf16 %v340, %v339
    %v351 = vpack.c.bf16 %v342, %v341
    %v352 = vpack.c.bf16 %v344, %v343
    %v353 = vld [vmem:[%s2] sm:$0xf]
    %v354 = vld [vmem:[%s2 + $0x4] sm:$0xf]
    %v355 = vld [vmem:[%s2 + $0x8] sm:$0xf]
    %v356 = vld [vmem:[%s2 + $0xc] sm:$0xf]
    %v357 = vld [vmem:[%s2 + $0x10] sm:$0xf]
    %v358 = vld [vmem:[%s2 + $0x14] sm:$0xf]
    %v359 = vld [vmem:[%s2 + $0x18] sm:$0xf]
    %v360 = vld [vmem:[%s2 + $0x1c] sm:$0xf]
    %v361 = vld [vmem:[%s2 + $0x20] sm:$0xf]
    %v362 = vld [vmem:[%s2 + $0x24] sm:$0xf]
    %v363 = vld [vmem:[%s2 + $0x28] sm:$0xf]
    %v364 = vld [vmem:[%s2 + $0x2c] sm:$0xf]
    %v365 = vld [vmem:[%s2 + $0x30] sm:$0xf]
    %v366 = vld [vmem:[%s2 + $0x34] sm:$0xf]
    %v367 = vld [vmem:[%s2 + $0x38] sm:$0xf]
    %v368 = vld [vmem:[%s2 + $0x3c] sm:$0xf]
    %v369 = vld [vmem:[%s3] sm:$0x1]
    %v371 = vlaneseq
    %v372 = vshrl.u32 %v371, 7
    %v373 = vsub.s32 0, %v372
    %v374 = vrot.slane %v369, %v373
    %v392 = vunpack.c.l.b16 %v353
    %v393 = vunpack.c.l.b16 %v354
    %v394 = vunpack.c.l.b16 %v355
    %v395 = vunpack.c.l.b16 %v356
    %v396 = vunpack.c.l.b16 %v357
    %v397 = vunpack.c.l.b16 %v358
    %v398 = vunpack.c.l.b16 %v359
    %v399 = vunpack.c.l.b16 %v360
    %v400 = vunpack.c.l.b16 %v361
    %v401 = vunpack.c.l.b16 %v362
    %v402 = vunpack.c.l.b16 %v363
    %v403 = vunpack.c.l.b16 %v364
    %v404 = vunpack.c.l.b16 %v365
    %v405 = vunpack.c.l.b16 %v366
    %v406 = vunpack.c.l.b16 %v367
    %v407 = vunpack.c.l.b16 %v368
    %v408 = vpack.c.b16 %v393, %v392
    %v409 = vpack.c.b16 %v395, %v394
    %v410 = vpack.c.b16 %v397, %v396
    %v411 = vpack.c.b16 %v399, %v398
    %v412 = vpack.c.b16 %v401, %v400
    %v413 = vpack.c.b16 %v403, %v402
    %v414 = vpack.c.b16 %v405, %v404
    %v415 = vpack.c.b16 %v407, %v406
    %424 = vmatprep.subr.bf16.mxu0 0
    %425 = vmatpush1.bf16.msra.mxu0 %v408
    %426 = vmatprep.subr.bf16.mxu0 0
    %427 = vmatpush1.bf16.msra.mxu0 %v409
    %428 = vmatprep.subr.bf16.mxu0 0
    %429 = vmatpush1.bf16.msra.mxu0 %v410
    %430 = vmatprep.subr.bf16.mxu0 0
    %431 = vmatpush1.bf16.msra.mxu0 %v411
    %432 = vmatprep.subr.bf16.mxu0 0
    %433 = vmatpush1.bf16.msra.mxu0 %v412
    %434 = vmatprep.subr.bf16.mxu0 0
    %435 = vmatpush1.bf16.msra.mxu0 %v413
    %436 = vmatprep.subr.bf16.mxu0 0
    %437 = vmatpush1.bf16.msra.mxu0 %v414
    %438 = vmatprep.subr.bf16.mxu0 0
    %439 = vmatpush1.bf16.msra.mxu0 %v415
    %440 = vmatprep.subr.bf16.mxu0 0
    %441 = vmatpush1.bf16.msra.mxu0 0
    %442 = vmatprep.subr.bf16.mxu0 0
    %443 = vmatpush1.bf16.msra.mxu0 0
    %444 = vmatprep.subr.bf16.mxu0 0
    %445 = vmatpush1.bf16.msra.mxu0 0
    %446 = vmatprep.subr.bf16.mxu0 0
    %447 = vmatpush1.bf16.msra.mxu0 0
    %448 = vmatprep.subr.bf16.mxu0 0
    %449 = vmatpush1.bf16.msra.mxu0 0
    %450 = vmatprep.subr.bf16.mxu0 0
    %451 = vmatpush1.bf16.msra.mxu0 0
    %452 = vmatprep.subr.bf16.mxu0 0
    %453 = vmatpush1.bf16.msra.mxu0 0
    %454 = vmatprep.subr.bf16.mxu0 0
    %455 = vmatpush1.bf16.msra.mxu0 0
    %456 = vmatprep.mubr.bf16.mxu0 0
    %457 = vmatmul.mubr.bf16.gmra.mrb[0].mxu0 %v345
    %v458 = vpop.f32.mrb[0].mxu0
    %v459 = vadd.f32 %v374, %v458
    %v460 = vpop.f32.mrb[0].mxu0
    %v461 = vpop.f32.mrb[0].mxu0
    %v462 = vadd.f32 %v374, %v461
    %v463 = vpop.f32.mrb[0].mxu0
    %464 = vmatprep.mubr.bf16.mxu0 0
    %465 = vmatmul.mubr.bf16.gmra.mrb[0].mxu0 %v346
    %v466 = vpop.f32.mrb[0].mxu0
    %v467 = vadd.f32 %v374, %v466
    %v468 = vpop.f32.mrb[0].mxu0
    %v469 = vpop.f32.mrb[0].mxu0
    %v470 = vadd.f32 %v374, %v469
    %v471 = vpop.f32.mrb[0].mxu0
    %472 = vmatprep.mubr.bf16.mxu0 0
    %473 = vmatmul.mubr.bf16.gmra.mrb[0].mxu0 %v347
    %v474 = vpop.f32.mrb[0].mxu0
    %v475 = vadd.f32 %v374, %v474
    %v476 = vpop.f32.mrb[0].mxu0
    %v477 = vpop.f32.mrb[0].mxu0
    %v478 = vadd.f32 %v374, %v477
    %v479 = vpop.f32.mrb[0].mxu0
    %480 = vmatprep.mubr.bf16.mxu0 0
    %481 = vmatmul.mubr.bf16.gmra.mrb[0].mxu0 %v348
    %v482 = vpop.f32.mrb[0].mxu0
    %v483 = vadd.f32 %v374, %v482
    %v484 = vpop.f32.mrb[0].mxu0
    %v485 = vpop.f32.mrb[0].mxu0
    %v486 = vadd.f32 %v374, %v485
    %v487 = vpop.f32.mrb[0].mxu0
    %488 = vmatprep.mubr.bf16.mxu0 0
    %489 = vmatmul.mubr.bf16.gmra.mrb[0].mxu0 %v349
    %v490 = vpop.f32.mrb[0].mxu0
    %v491 = vadd.f32 %v374, %v490
    %v492 = vpop.f32.mrb[0].mxu0
    %v493 = vpop.f32.mrb[0].mxu0
    %v494 = vadd.f32 %v374, %v493
    %v495 = vpop.f32.mrb[0].mxu0
    %496 = vmatprep.mubr.bf16.mxu0 0
    %497 = vmatmul.mubr.bf16.gmra.mrb[0].mxu0 %v350
    %v498 = vpop.f32.mrb[0].mxu0
    %v499 = vadd.f32 %v374, %v498
    %v500 = vpop.f32.mrb[0].mxu0
    %v501 = vpop.f32.mrb[0].mxu0
    %v502 = vadd.f32 %v374, %v501
    %v503 = vpop.f32.mrb[0].mxu0
    %504 = vmatprep.mubr.bf16.mxu0 0
    %505 = vmatmul.mubr.bf16.gmra.mrb[0].mxu0 %v351
    %v506 = vpop.f32.mrb[0].mxu0
    %v507 = vadd.f32 %v374, %v506
    %v508 = vpop.f32.mrb[0].mxu0
    %v509 = vpop.f32.mrb[0].mxu0
    %v510 = vadd.f32 %v374, %v509
    %v511 = vpop.f32.mrb[0].mxu0
    %512 = vmatprep.mubr.bf16.mxu0 0
    %513 = vmatmul.mubr.bf16.gmra.mrb[0].mxu0 %v352
    %v514 = vpop.f32.mrb[0].mxu0
    %v515 = vadd.f32 %v374, %v514
    %v516 = vpop.f32.mrb[0].mxu0
    %v517 = vpop.f32.mrb[0].mxu0
    %v518 = vadd.f32 %v374, %v517
    %v519 = vpop.f32.mrb[0].mxu0
    %520 = vdwg.mxu0
    %vm521 = vcmp.ge.f32.partialorder %v459, 0.0
    %vm522 = vcmp.ge.f32.partialorder %v462, 0.0
    %vm523 = vcmp.ge.f32.partialorder %v467, 0.0
    %vm524 = vcmp.ge.f32.partialorder %v470, 0.0
    %vm525 = vcmp.ge.f32.partialorder %v475, 0.0
    %vm526 = vcmp.ge.f32.partialorder %v478, 0.0
    %vm527 = vcmp.ge.f32.partialorder %v483, 0.0
    %vm528 = vcmp.ge.f32.partialorder %v486, 0.0
    %vm529 = vcmp.ge.f32.partialorder %v491, 0.0
    %vm530 = vcmp.ge.f32.partialorder %v494, 0.0
    %vm531 = vcmp.ge.f32.partialorder %v499, 0.0
    %vm532 = vcmp.ge.f32.partialorder %v502, 0.0
    %vm533 = vcmp.ge.f32.partialorder %v507, 0.0
    %vm534 = vcmp.ge.f32.partialorder %v510, 0.0
    %vm535 = vcmp.ge.f32.partialorder %v515, 0.0
    %vm536 = vcmp.ge.f32.partialorder %v518, 0.0
    %v537 = vmul.f32 %v459, 0.2
    %v538 = vmul.f32 %v462, 0.2
    %v539 = vmul.f32 %v467, 0.2
    %v540 = vmul.f32 %v470, 0.2
    %v541 = vmul.f32 %v475, 0.2
    %v542 = vmul.f32 %v478, 0.2
    %v543 = vmul.f32 %v483, 0.2
    %v544 = vmul.f32 %v486, 0.2
    %v545 = vmul.f32 %v491, 0.2
    %v546 = vmul.f32 %v494, 0.2
    %v547 = vmul.f32 %v499, 0.2
    %v548 = vmul.f32 %v502, 0.2
    %v549 = vmul.f32 %v507, 0.2
    %v550 = vmul.f32 %v510, 0.2
    %v551 = vmul.f32 %v515, 0.2
    %v552 = vmul.f32 %v518, 0.2
    %v553 = vsel %vm521, %v459, %v537
    %v554 = vsel %vm522, %v462, %v538
    %v555 = vsel %vm523, %v467, %v539
    %v556 = vsel %vm524, %v470, %v540
    %v557 = vsel %vm525, %v475, %v541
    %v558 = vsel %vm526, %v478, %v542
    %v559 = vsel %vm527, %v483, %v543
    %v560 = vsel %vm528, %v486, %v544
    %v561 = vsel %vm529, %v491, %v545
    %v562 = vsel %vm530, %v494, %v546
    %v563 = vsel %vm531, %v499, %v547
    %v564 = vsel %vm532, %v502, %v548
    %v565 = vsel %vm533, %v507, %v549
    %v566 = vsel %vm534, %v510, %v550
    %v567 = vsel %vm535, %v515, %v551
    %v568 = vsel %vm536, %v518, %v552
    %v569 = vld [vmem:[#allocation3] sm:$0xff]
    %v570 = vld [vmem:[%s4] sm:$0xf]
    %v571 = vpack.c.bf16 %v554, %v553
    %v572 = vpack.c.bf16 %v556, %v555
    %v573 = vpack.c.bf16 %v558, %v557
    %v574 = vpack.c.bf16 %v560, %v559
    %v575 = vpack.c.bf16 %v562, %v561
    %v576 = vpack.c.bf16 %v564, %v563
    %v577 = vpack.c.bf16 %v566, %v565
    %v578 = vpack.c.bf16 %v568, %v567
    %579 = vmatprep.subr.bf16.mxu0 0
    %580 = vmatpush1.bf16.msra.mxu0 %v571
    %581 = vmatprep.subr.bf16.mxu0 0
    %582 = vmatpush1.bf16.msra.mxu0 %v572
    %583 = vmatprep.subr.bf16.mxu0 0
    %584 = vmatpush1.bf16.msra.mxu0 %v573
    %585 = vmatprep.subr.bf16.mxu0 0
    %586 = vmatpush1.bf16.msra.mxu0 %v574
    %587 = vmatprep.subr.bf16.mxu0 0
    %588 = vmatpush1.bf16.msra.mxu0 %v575
    %589 = vmatprep.subr.bf16.mxu0 0
    %590 = vmatpush1.bf16.msra.mxu0 %v576
    %591 = vmatprep.subr.bf16.mxu0 0
    %592 = vmatpush1.bf16.msra.mxu0 %v577
    %593 = vmatprep.subr.bf16.mxu0 0
    %594 = vmatpush1.bf16.msra.mxu0 %v578
    %595 = vmatprep.subr.bf16.mxu0 0
    %596 = vmatpush1.bf16.msra.mxu0 0
    %597 = vmatprep.subr.bf16.mxu0 0
    %598 = vmatpush1.bf16.msra.mxu0 0
    %599 = vmatprep.subr.bf16.mxu0 0
    %600 = vmatpush1.bf16.msra.mxu0 0
    %601 = vmatprep.subr.bf16.mxu0 0
    %602 = vmatpush1.bf16.msra.mxu0 0
    %603 = vmatprep.subr.bf16.mxu0 0
    %604 = vmatpush1.bf16.msra.mxu0 0
    %605 = vmatprep.subr.bf16.mxu0 0
    %606 = vmatpush1.bf16.msra.mxu0 0
    %607 = vmatprep.subr.bf16.mxu0 0
    %608 = vmatpush1.bf16.msra.mxu0 0
    %609 = vmatprep.subr.bf16.mxu0 0
    %610 = vmatpush1.bf16.msra.mxu0 0
    %611 = vmatprep.mubr.bf16.mxu0 0
    %612 = vmatmul.mubr.bf16.gmra.mrb[0].mxu0 %v570
    %v613 = vpop.f32.mrb[0].mxu0
    %v614 = vadd.f32 0.0, %v613
    %v615 = vpop.f32.mrb[0].mxu0
    %v616 = vpop.f32.mrb[0].mxu0
    %v617 = vpop.f32.mrb[0].mxu0
    %618 = vdwg.mxu0
    %v619 = vadd.f32 %v569, %v614
    %620 = vst [vmem:[#allocation3] sm:$0xff] %v619
  $region41: #{gcn_forward.3} parent=0 // pred_fallthru
    _
  // Predicated region
  $region42: #{gcn_forward.3} parent=0 // pred_check
    _
  $region43: #{gcn_forward.3} parent=0 // pred_check_branch
    %622 = sbr.rel (%p29) target = $region45
  $region44: #{gcn_forward.3} parent=0 // pred_region
    %v623 = vld [vmem:[#allocation3] sm:$0xff]
    %v624 = vpack.c.bf16 %v623, %v623
    %v625 = vld [vmem:[%s5] sm:$0xf]
    %v626 = vld [vmem:[%s5 + $0x4] sm:$0xf]
    %v627 = vld [vmem:[%s5 + $0x8] sm:$0xf]
    %v628 = vld [vmem:[%s5 + $0xc] sm:$0xf]
    %v629 = vld [vmem:[%s5 + $0x10] sm:$0xf]
    %v630 = vld [vmem:[%s5 + $0x14] sm:$0xf]
    %v631 = vld [vmem:[%s5 + $0x18] sm:$0xf]
    %v632 = vld [vmem:[%s5 + $0x1c] sm:$0xf]
    %v633 = vld [vmem:[%s5 + $0x20] sm:$0xf]
    %v634 = vld [vmem:[%s5 + $0x24] sm:$0xf]
    %v635 = vld [vmem:[%s5 + $0x28] sm:$0xf]
    %v636 = vld [vmem:[%s5 + $0x2c] sm:$0xf]
    %v637 = vld [vmem:[%s5 + $0x30] sm:$0xf]
    %v638 = vld [vmem:[%s5 + $0x34] sm:$0xf]
    %v639 = vld [vmem:[%s5 + $0x38] sm:$0xf]
    %v640 = vld [vmem:[%s5 + $0x3c] sm:$0xf]
    %v641 = vld [vmem:[%s6] sm:$0x1]
    %v643 = vlaneseq
    %v644 = vshrl.u32 %v643, 7
    %v645 = vsub.s32 0, %v644
    %v646 = vrot.slane %v641, %v645
    %v664 = vunpack.c.l.b16 %v625
    %v665 = vunpack.c.l.b16 %v626
    %v666 = vunpack.c.l.b16 %v627
    %v667 = vunpack.c.l.b16 %v628
    %v668 = vunpack.c.l.b16 %v629
    %v669 = vunpack.c.l.b16 %v630
    %v670 = vunpack.c.l.b16 %v631
    %v671 = vunpack.c.l.b16 %v632
    %v672 = vunpack.c.l.b16 %v633
    %v673 = vunpack.c.l.b16 %v634
    %v674 = vunpack.c.l.b16 %v635
    %v675 = vunpack.c.l.b16 %v636
    %v676 = vunpack.c.l.b16 %v637
    %v677 = vunpack.c.l.b16 %v638
    %v678 = vunpack.c.l.b16 %v639
    %v679 = vunpack.c.l.b16 %v640
    %v680 = vpack.c.b16 %v665, %v664
    %v681 = vpack.c.b16 %v667, %v666
    %v682 = vpack.c.b16 %v669, %v668
    %v683 = vpack.c.b16 %v671, %v670
    %v684 = vpack.c.b16 %v673, %v672
    %v685 = vpack.c.b16 %v675, %v674
    %v686 = vpack.c.b16 %v677, %v676
    %v687 = vpack.c.b16 %v679, %v678
    %696 = vmatprep.subr.bf16.mxu0 0
    %697 = vmatpush1.bf16.msra.mxu0 %v680
    %698 = vmatprep.subr.bf16.mxu0 0
    %699 = vmatpush1.bf16.msra.mxu0 %v681
    %700 = vmatprep.subr.bf16.mxu0 0
    %701 = vmatpush1.bf16.msra.mxu0 %v682
    %702 = vmatprep.subr.bf16.mxu0 0
    %703 = vmatpush1.bf16.msra.mxu0 %v683
    %704 = vmatprep.subr.bf16.mxu0 0
    %705 = vmatpush1.bf16.msra.mxu0 %v684
    %706 = vmatprep.subr.bf16.mxu0 0
    %707 = vmatpush1.bf16.msra.mxu0 %v685
    %708 = vmatprep.subr.bf16.mxu0 0
    %709 = vmatpush1.bf16.msra.mxu0 %v686
    %710 = vmatprep.subr.bf16.mxu0 0
    %711 = vmatpush1.bf16.msra.mxu0 %v687
    %712 = vmatprep.subr.bf16.mxu0 0
    %713 = vmatpush1.bf16.msra.mxu0 0
    %714 = vmatprep.subr.bf16.mxu0 0
    %715 = vmatpush1.bf16.msra.mxu0 0
    %716 = vmatprep.subr.bf16.mxu0 0
    %717 = vmatpush1.bf16.msra.mxu0 0
    %718 = vmatprep.subr.bf16.mxu0 0
    %719 = vmatpush1.bf16.msra.mxu0 0
    %720 = vmatprep.subr.bf16.mxu0 0
    %721 = vmatpush1.bf16.msra.mxu0 0
    %722 = vmatprep.subr.bf16.mxu0 0
    %723 = vmatpush1.bf16.msra.mxu0 0
    %724 = vmatprep.subr.bf16.mxu0 0
    %725 = vmatpush1.bf16.msra.mxu0 0
    %726 = vmatprep.subr.bf16.mxu0 0
    %727 = vmatpush1.bf16.msra.mxu0 0
    %728 = vmatprep.mubr.bf16.mxu0 0
    %729 = vmatmul.mubr.bf16.gmra.mrb[0].mxu0 %v624
    %v730 = vpop.f32.mrb[0].mxu0
    %v731 = vadd.f32 %v646, %v730
    %v732 = vpop.f32.mrb[0].mxu0
    %v733 = vpop.f32.mrb[0].mxu0
    %v734 = vpop.f32.mrb[0].mxu0
    %735 = vdwg.mxu0
    %736 = vst [vmem:[%s7] sm:$0xff] %v731
  $region45: #{gcn_forward.3} parent=0 // pred_fallthru
    _
  // Predicated region
  $region46: #{gcn_forward.3} parent=0 // pred_check
    _
  $region47: #{gcn_forward.3} parent=0 // pred_check_branch
    %738 = sbr.rel (0) target = $region49
  $region48: #{gcn_forward.3} parent=0 // pred_region
    _
  $region49: #{gcn_forward.3} parent=0 // pred_fallthru
    _
  // Predicated region
  $region50: #{gcn_forward.3} parent=0 // pred_check
    _
  $region51: #{gcn_forward.3} parent=0 // pred_check_branch
    %740 = sbr.rel (0) target = $region53
  $region52: #{gcn_forward.3} parent=0 // pred_region
    _
  $region53: #{gcn_forward.3} parent=0 // pred_fallthru
    _

</llo_original>
